<compile_context>
chip_gen: v5e
topology: v5e:2x2
jax: 0.10.0
libtpu: 0.0.40
codegen_flags: <defaults>
</compile_context>

<pallas_src>
import functools

import jax
import jax.numpy as jnp
from jax.experimental import pallas as pl
from jax.experimental.pallas import tpu as pltpu

LANE = 128                              # TPU lane width; all feature axes pad to this
VMEM_LIMIT_BYTES = 64 * 1024 * 1024     # <= physical VMEM on v5e/v6e/v7x


def _round_up(x, m):
    return ((x + m - 1) // m) * m


def _pad2(a, rows, cols, dtype=None):
    """Zero-pad a 2-D array to (rows, cols), optionally casting."""
    dtype = a.dtype if dtype is None else dtype
    out = jnp.zeros((rows, cols), dtype)
    return out.at[: a.shape[0], : a.shape[1]].set(a.astype(dtype))


def _row_tile(padded_rows, preferred=256):
    """Row-tile size: prefer 256, fall back to 128 (padded_rows is a multiple of 128)."""
    return preferred if padded_rows % preferred == 0 else LANE


# ----------------------------------------------------------------------------
# Kernel 1: fused PE projection + full GCN layer stack.
# grid = (num_layers, num_node_row_tiles); h is resident in VMEM (ping-pong),
# weights are resident, A_hat is streamed as bf16 (tm, N) row panels.
# ----------------------------------------------------------------------------
def _gcn_stack_kernel(pe_ref, wpe_ref, bpe_ref, a_ref, wg_ref, bg_ref,
                      o_ref, buf_a, buf_b, hw_ref, *, tm):
    l = pl.program_id(0)          # layer index   (outer, sequential)
    i = pl.program_id(1)          # node-row tile (inner, sequential)
    read_a = (l % 2) == 0         # even layers read buf_a and write buf_b

    # One-time init: h0 = pe @ W_pe + b_pe, kept resident in buf_a.
    @pl.when((l == 0) & (i == 0))
    def _():
        h0 = jnp.dot(pe_ref[...].astype(jnp.bfloat16), wpe_ref[...],
                     preferred_element_type=jnp.float32)
        buf_a[...] = h0 + bpe_ref[...]

    # Once per layer: HW = H @ W_l (full), stored bf16 for the A_hat matmul.
    @pl.when(i == 0)
    def _():
        h_cur = jnp.where(read_a, buf_a[...], buf_b[...])
        hw_ref[...] = jnp.dot(h_cur.astype(jnp.bfloat16), wg_ref[l],
                              preferred_element_type=jnp.float32
                              ).astype(jnp.bfloat16)

    # Row-panel aggregation: rows = A_hat[i*tm:(i+1)*tm, :] @ HW + b_l, ReLU.
    rows = jnp.dot(a_ref[...], hw_ref[...], preferred_element_type=jnp.float32)
    rows = jnp.maximum(rows + bg_ref[l], 0.0)

    # Lane-dense output store; only the last layer's writes survive in HBM.
    o_ref[...] = rows

    # Ping-pong: write the new h rows into the other resident buffer.
    row0 = pl.multiple_of(i * tm, tm)

    @pl.when(read_a)
    def _():
        buf_b[pl.ds(row0, tm), :] = rows

    @pl.when(jnp.logical_not(read_a))
    def _():
        buf_a[pl.ds(row0, tm), :] = rows


def gcn_stack(pe_p, w_pe, b_pe, a_p, wg, bg, *, tm):
    n_pad, pe_feat = pe_p.shape
    f_pad = w_pe.shape[1]
    num_layers = wg.shape[0]
    grid = (num_layers, n_pad // tm)
    return pl.pallas_call(
        functools.partial(_gcn_stack_kernel, tm=tm),
        out_shape=jax.ShapeDtypeStruct((n_pad, f_pad), jnp.float32),
        grid=grid,
        in_specs=[
            pl.BlockSpec((n_pad, pe_feat), lambda l, i: (0, 0)),               # pe (resident)
            pl.BlockSpec((pe_feat, f_pad), lambda l, i: (0, 0)),               # W_pe
            pl.BlockSpec((1, f_pad), lambda l, i: (0, 0)),                     # b_pe
            pl.BlockSpec((tm, n_pad), lambda l, i: (i, 0)),                    # A_hat panel
            pl.BlockSpec((num_layers, f_pad, f_pad), lambda l, i: (0, 0, 0)),  # W stack
            pl.BlockSpec((num_layers, 1, f_pad), lambda l, i: (0, 0, 0)),      # b stack
        ],
        out_specs=pl.BlockSpec((tm, f_pad), lambda l, i: (i, 0)),
        scratch_shapes=[
            pltpu.VMEM((n_pad, f_pad), jnp.float32),    # h buffer A
            pltpu.VMEM((n_pad, f_pad), jnp.float32),    # h buffer B
            pltpu.VMEM((n_pad, f_pad), jnp.bfloat16),   # HW for the current layer
        ],
        compiler_params=pltpu.CompilerParams(
            dimension_semantics=("arbitrary", "arbitrary"),
            vmem_limit_bytes=VMEM_LIMIT_BYTES),
    )(pe_p, w_pe, b_pe, a_p, wg, bg)


# ----------------------------------------------------------------------------
# Kernel 2: fused edge MLP  e -> linear2_edge(relu(linear1_edge(e))).
# ----------------------------------------------------------------------------
def _edge_mlp_kernel(e_ref, w1_ref, b1_ref, w2_ref, b2_ref, o_ref):
    h = jnp.dot(e_ref[...].astype(jnp.bfloat16), w1_ref[...],
                preferred_element_type=jnp.float32) + b1_ref[...]
    h = jnp.maximum(h, 0.0)
    o_ref[...] = jnp.dot(h.astype(jnp.bfloat16), w2_ref[...],
                         preferred_element_type=jnp.float32) + b2_ref[...]


def edge_mlp(e_p, w1, b1, w2, b2, *, te):
    e_pad, fin = e_p.shape
    fhid = w1.shape[1]
    fout = w2.shape[1]
    return pl.pallas_call(
        _edge_mlp_kernel,
        out_shape=jax.ShapeDtypeStruct((e_pad, fout), jnp.float32),
        grid=(e_pad // te,),
        in_specs=[
            pl.BlockSpec((te, fin), lambda t: (t, 0)),
            pl.BlockSpec((fin, fhid), lambda t: (0, 0)),
            pl.BlockSpec((1, fhid), lambda t: (0, 0)),
            pl.BlockSpec((fhid, fout), lambda t: (0, 0)),
            pl.BlockSpec((1, fout), lambda t: (0, 0)),
        ],
        out_specs=pl.BlockSpec((te, fout), lambda t: (t, 0)),
        compiler_params=pltpu.CompilerParams(
            dimension_semantics=("parallel",),
            vmem_limit_bytes=VMEM_LIMIT_BYTES),
    )(e_p, w1, b1, w2, b2)


# ----------------------------------------------------------------------------
# Kernel 3: fused score predictor with split W1 (no [E, 3H] concat) and a
# lane-dense [E, 128] score output (true score is column 0).
# ----------------------------------------------------------------------------
def _score_predictor_kernel(hs_ref, hd_ref, eh_ref, w1a_ref, w1b_ref, w1c_ref,
                            b1_ref, w2_ref, b2_ref, o_ref):
    z = jnp.dot(hs_ref[...].astype(jnp.bfloat16), w1a_ref[...],
                preferred_element_type=jnp.float32)
    z = z + jnp.dot(hd_ref[...].astype(jnp.bfloat16), w1b_ref[...],
                    preferred_element_type=jnp.float32)
    z = z + jnp.dot(eh_ref[...].astype(jnp.bfloat16), w1c_ref[...],
                    preferred_element_type=jnp.float32)
    z = jnp.maximum(z + b1_ref[...], 0.0)
    o_ref[...] = jnp.dot(z.astype(jnp.bfloat16), w2_ref[...],
                         preferred_element_type=jnp.float32) + b2_ref[...]


def score_predictor(h_src, h_dst, e_h, w1a, w1b, w1c, b1, w2, b2, *, te):
    e_pad, f_pad = h_src.shape
    s_pad = w1a.shape[1]
    out_w = w2.shape[1]
    return pl.pallas_call(
        _score_predictor_kernel,
        out_shape=jax.ShapeDtypeStruct((e_pad, out_w), jnp.float32),
        grid=(e_pad // te,),
        in_specs=[
            pl.BlockSpec((te, f_pad), lambda t: (t, 0)),
            pl.BlockSpec((te, f_pad), lambda t: (t, 0)),
            pl.BlockSpec((te, f_pad), lambda t: (t, 0)),
            pl.BlockSpec((f_pad, s_pad), lambda t: (0, 0)),
            pl.BlockSpec((f_pad, s_pad), lambda t: (0, 0)),
            pl.BlockSpec((f_pad, s_pad), lambda t: (0, 0)),
            pl.BlockSpec((1, s_pad), lambda t: (0, 0)),
            pl.BlockSpec((s_pad, out_w), lambda t: (0, 0)),
            pl.BlockSpec((1, out_w), lambda t: (0, 0)),
        ],
        out_specs=pl.BlockSpec((te, out_w), lambda t: (t, 0)),
        compiler_params=pltpu.CompilerParams(
            dimension_semantics=("parallel",),
            vmem_limit_bytes=VMEM_LIMIT_BYTES),
    )(h_src, h_dst, e_h, w1a, w1b, w1c, b1, w2, b2)


# ----------------------------------------------------------------------------
# Plain-JAX glue (graph preprocessing, parameter setup, padding).
# ----------------------------------------------------------------------------
def build_norm_adj(src, dst, num_nodes):
    """Dense normalized adjacency of the self-looped graph.

    A_hat[v, u] = 1 / (sqrt(out_deg(u)) * sqrt(in_deg(v))) for every edge u->v,
    so that h' = A_hat @ h reproduces DGL GraphConv(norm='both') aggregation.
    """
    loops = jnp.arange(num_nodes, dtype=src.dtype)
    src_sl = jnp.concatenate([src, loops])   # dgl.add_self_loop
    dst_sl = jnp.concatenate([dst, loops])
    a = jnp.zeros((num_nodes, num_nodes), jnp.float32).at[dst_sl, src_sl].add(1.0)
    out_deg = a.sum(axis=0)                  # per source node
    in_deg = a.sum(axis=1)                   # per destination node
    norm = (1.0 / jnp.sqrt(in_deg))[:, None] * (1.0 / jnp.sqrt(out_deg))[None, :]
    return a * norm


def init_linear(key, in_f, out_f):
    """Deterministic PyTorch-Linear-style init (uniform(-1/sqrt(in), 1/sqrt(in)))."""
    k1, k2 = jax.random.split(key)
    lim = 1.0 / jnp.sqrt(jnp.float32(in_f))
    w = jax.random.uniform(k1, (in_f, out_f), jnp.float32, -lim, lim)
    b = jax.random.uniform(k2, (out_f,), jnp.float32, -lim, lim)
    return w, b


def init_params(key, node_features, edge_features, hidden_features,
                hidden_edge_features, num_layers, hidden_edge_scores, nb_pos_enc):
    hidden_node_features = hidden_edge_features
    keys = jax.random.split(key, 8 + num_layers)
    return {
        "linear_pe": init_linear(keys[0], nb_pos_enc + 2, hidden_features),
        "linear1_node": init_linear(keys[1], node_features, hidden_node_features),    # unused in fwd
        "linear2_node": init_linear(keys[2], hidden_node_features, hidden_features),  # unused in fwd
        "linear1_edge": init_linear(keys[3], edge_features, hidden_edge_features),
        "linear2_edge": init_linear(keys[4], hidden_edge_features, hidden_features),
        "pred_W1": init_linear(keys[5], 3 * hidden_features, hidden_edge_scores),
        "pred_W2": init_linear(keys[6], hidden_edge_scores, 1),
        "gcn": [init_linear(keys[7 + l], hidden_features, hidden_features)
                for l in range(num_layers)],
    }


def pathnn_model_forward(params, src, dst, x, e, pe, num_nodes):
    # x (node features input) is overwritten by the PE projection, as in PyTorch.
    del x
    n = num_nodes
    n_edges = src.shape[0]
    hidden = params["linear_pe"][0].shape[1]

    f32, bf16 = jnp.float32, jnp.bfloat16
    f_pad = _round_up(hidden, LANE)
    pe_in_pad = _round_up(params["linear_pe"][0].shape[0], LANE)
    e_in_pad = _round_up(params["linear1_edge"][0].shape[0], LANE)
    e_hid_pad = _round_up(params["linear1_edge"][0].shape[1], LANE)
    s_pad = _round_up(params["pred_W1"][0].shape[1], LANE)
    n_pad = _round_up(n, LANE)
    e_pad = _round_up(n_edges, LANE)
    tm = _row_tile(n_pad)     # node-row tile (re-derive / shrink for v7x at huge N)
    te = _row_tile(e_pad)     # edge-row tile

    # --- padded parameters: weights bf16, biases f32 pre-shaped as (1, F) rows ---
    w_pe, b_pe = params["linear_pe"]
    w1e, b1e = params["linear1_edge"]
    w2e, b2e = params["linear2_edge"]
    w1, b1 = params["pred_W1"]
    w2, b2 = params["pred_W2"]

    w_pe_p = _pad2(w_pe, pe_in_pad, f_pad, bf16)
    b_pe_p = _pad2(b_pe.reshape(1, -1), 1, f_pad, f32)
    w1e_p = _pad2(w1e, e_in_pad, e_hid_pad, bf16)
    b1e_p = _pad2(b1e.reshape(1, -1), 1, e_hid_pad, f32)
    w2e_p = _pad2(w2e, e_hid_pad, f_pad, bf16)
    b2e_p = _pad2(b2e.reshape(1, -1), 1, f_pad, f32)
    wg_p = jnp.stack([_pad2(w, f_pad, f_pad, bf16) for (w, _) in params["gcn"]])
    bg_p = jnp.stack([_pad2(b.reshape(1, -1), 1, f_pad, f32) for (_, b) in params["gcn"]])
    # ScorePredictor: split W1 so cat([h_src, h_dst, e]) @ W1 == hs@W1a + hd@W1b + e@W1c.
    w1a_p = _pad2(w1[:hidden], f_pad, s_pad, bf16)
    w1b_p = _pad2(w1[hidden:2 * hidden], f_pad, s_pad, bf16)
    w1c_p = _pad2(w1[2 * hidden:], f_pad, s_pad, bf16)
    b1_p = _pad2(b1.reshape(1, -1), 1, s_pad, f32)
    w2_p = _pad2(w2, s_pad, LANE, bf16)          # lane-dense scores (true column 0)
    b2_p = _pad2(b2.reshape(1, -1), 1, LANE, f32)

    # --- padded activations & normalized self-looped adjacency (bf16 stream) ---
    pe_p = _pad2(pe, n_pad, pe_in_pad, f32)
    e_p = _pad2(e, e_pad, e_in_pad, f32)
    a_p = _pad2(build_norm_adj(src, dst, n), n_pad, n_pad, bf16)
    # TODO(synk): for realistic sparse graphs replace the dense A_hat stream with a
    #             CSR/segment-sum aggregation kernel (scalar-prefetched row offsets).

    # --- fused Pallas kernels ---
    h = gcn_stack(pe_p, w_pe_p, b_pe_p, a_p, wg_p, bg_p, tm=tm)     # [n_pad, f_pad]
    e_h = edge_mlp(e_p, w1e_p, b1e_p, w2e_p, b2e_p, te=te)          # [e_pad, f_pad]

    # Edge-endpoint gather on the ORIGINAL graph edges (kept in XLA for robustness).
    # TODO(synk): move the h[src]/h[dst] row gather into the predictor kernel via
    #             scalar-prefetched indices + in-kernel DMA gather.
    src_p = jnp.zeros((e_pad,), src.dtype).at[:n_edges].set(src)
    dst_p = jnp.zeros((e_pad,), dst.dtype).at[:n_edges].set(dst)
    h_src = jnp.take(h, src_p, axis=0)                              # [e_pad, f_pad]
    h_dst = jnp.take(h, dst_p, axis=0)

    scores = score_predictor(h_src, h_dst, e_h, w1a_p, w1b_p, w1c_p,
                             b1_p, w2_p, b2_p, te=te)               # [e_pad, 128]
    return scores[:n_edges, :1]


# ----------------------------------------------------------------------------
# Demo
# ----------------------------------------------------------------------------
if __name__ == "__main__":
    N_NODES = 32
    N_EDGES = 64
    NODE_FEATURES = 6
    EDGE_FEATURES = 2
    HIDDEN_FEATURES = 32
    HIDDEN_EDGE_FEATURES = 16
    HIDDEN_EDGE_SCORES = 16
    NUM_LAYERS = 2
    NB_POS_ENC = 8

    root = jax.random.PRNGKey(0)
    k_param, k_src, k_dst, k_x, k_e, k_pe = jax.random.split(root, 6)

    params = init_params(
        k_param, NODE_FEATURES, EDGE_FEATURES, HIDDEN_FEATURES,
        HIDDEN_EDGE_FEATURES, NUM_LAYERS, HIDDEN_EDGE_SCORES, NB_POS_ENC)

    # Synthetic directed graph (edge list) + features.
    src = jax.random.randint(k_src, (N_EDGES,), 0, N_NODES, dtype=jnp.int32)
    dst = jax.random.randint(k_dst, (N_EDGES,), 0, N_NODES, dtype=jnp.int32)
    x = jax.random.normal(k_x, (N_NODES, NODE_FEATURES), jnp.float32)
    e = jax.random.normal(k_e, (N_EDGES, EDGE_FEATURES), jnp.float32)
    pe = jax.random.normal(k_pe, (N_NODES, NB_POS_ENC + 2), jnp.float32)

    fwd = jax.jit(pathnn_model_forward, static_argnames=("num_nodes",))
    scores = fwd(params, src, dst, x, e, pe, num_nodes=N_NODES)
    jax.block_until_ready(scores)

    assert scores.shape == (N_EDGES, 1)
    assert bool(jnp.all(jnp.isfinite(scores)))
    print("KERNEL_OK")
</pallas_src>

<mosaic_0001>
module attributes {stable_mosaic.version = 11 : i64} {
  func.func @_gcn_stack_kernel(%arg0: i32, %arg1: i32, %arg2: memref<128x128xf32, #tpu.memory_space<vmem>>, %arg3: memref<128x128xbf16, #tpu.memory_space<vmem>>, %arg4: memref<1x128xf32, #tpu.memory_space<vmem>>, %arg5: memref<128x128xbf16, #tpu.memory_space<vmem>>, %arg6: memref<2x128x128xbf16, #tpu.memory_space<vmem>>, %arg7: memref<2x1x128xf32, #tpu.memory_space<vmem>>, %arg8: memref<128x128xf32, #tpu.memory_space<vmem>>, %arg9: memref<128x128xf32, #tpu.memory_space<vmem>>, %arg10: memref<128x128xf32, #tpu.memory_space<vmem>>, %arg11: memref<128x128xbf16, #tpu.memory_space<vmem>>) attributes {dimension_semantics = [#tpu.dimension_semantics<arbitrary>, #tpu.dimension_semantics<arbitrary>], iteration_bounds = array<i64: 2, 1>, scalar_prefetch = 0 : i64, scratch_operands = 3 : i64, tpu.core_type = #tpu.core_type<tc>, window_params = [{pipeline_mode = #tpu.pipeline_mode<synchronous>, transform_indices = @transform_0, window_bounds = array<i64: 128, 128>}, {pipeline_mode = #tpu.pipeline_mode<synchronous>, transform_indices = @transform_1, window_bounds = array<i64: 128, 128>}, {pipeline_mode = #tpu.pipeline_mode<synchronous>, transform_indices = @transform_2, window_bounds = array<i64: 1, 128>}, {transform_indices = @transform_3, window_bounds = array<i64: 128, 128>}, {pipeline_mode = #tpu.pipeline_mode<synchronous>, transform_indices = @transform_4, window_bounds = array<i64: 2, 128, 128>}, {pipeline_mode = #tpu.pipeline_mode<synchronous>, transform_indices = @transform_5, window_bounds = array<i64: 2, 1, 128>}, {transform_indices = @transform_6, window_bounds = array<i64: 128, 128>}]} {
    %c2_i32 = arith.constant 2 : i32
    %c0_i32 = arith.constant 0 : i32
    %0 = arith.cmpi eq, %c2_i32, %c0_i32 : i32
    %c1_i32 = arith.constant 1 : i32
    %1 = arith.select %0, %c1_i32, %c2_i32 : i32
    %2 = arith.remsi %arg0, %1 : i32
    %c0_i32_0 = arith.constant 0 : i32
    %3 = arith.cmpi ne, %2, %c0_i32_0 : i32
    %c0_i32_1 = arith.constant 0 : i32
    %4 = arith.cmpi slt, %2, %c0_i32_1 : i32
    %c0_i32_2 = arith.constant 0 : i32
    %5 = arith.cmpi slt, %1, %c0_i32_2 : i32
    %6 = arith.xori %4, %5 : i1
    %7 = arith.andi %6, %3 : i1
    %8 = arith.addi %2, %1 : i32
    %9 = arith.select %7, %8, %2 : i32
    %c0_i32_3 = arith.constant 0 : i32
    %10 = arith.cmpi eq, %9, %c0_i32_3 : i32
    %c0_i32_4 = arith.constant 0 : i32
    %11 = arith.cmpi eq, %arg0, %c0_i32_4 : i32
    %c0_i32_5 = arith.constant 0 : i32
    %12 = arith.cmpi eq, %arg1, %c0_i32_5 : i32
    %13 = arith.andi %11, %12 : i1
    %14 = arith.extui %13 : i1 to i32
    %c0_i32_6 = arith.constant 0 : i32
    %15 = arith.cmpi ne, %14, %c0_i32_6 : i32
    scf.if %15 {
      %c0_19 = arith.constant 0 : index
      %c0_20 = arith.constant 0 : index
      %37 = vector.load %arg2[%c0_19, %c0_20] : memref<128x128xf32, #tpu.memory_space<vmem>>, vector<128x128xf32>
      %38 = arith.truncf %37 : vector<128x128xf32> to vector<128x128xbf16>
      %c0_21 = arith.constant 0 : index
      %c0_22 = arith.constant 0 : index
      %39 = vector.load %arg3[%c0_21, %c0_22] : memref<128x128xbf16, #tpu.memory_space<vmem>>, vector<128x128xbf16>
      %cst_23 = arith.constant dense<0.000000e+00> : vector<128x128xf32>
      %40 = tpu.matmul %38, %39, %cst_23 {dimension_numbers = #tpu.dot_dimension_numbers<[1], [0], [0], [1], [0, 0, 1, 1], [], []>} : vector<128x128xbf16>, vector<128x128xbf16>, vector<128x128xf32> -> vector<128x128xf32>
      %c0_24 = arith.constant 0 : index
      %c0_25 = arith.constant 0 : index
      %41 = vector.load %arg4[%c0_24, %c0_25] : memref<1x128xf32, #tpu.memory_space<vmem>>, vector<1x128xf32>
      %42 = vector.broadcast %41 : vector<1x128xf32> to vector<128x128xf32>
      %43 = arith.addf %40, %42 : vector<128x128xf32>
      %c0_26 = arith.constant 0 : index
      %c0_27 = arith.constant 0 : index
      %44 = vector.load %arg9[%c0_26, %c0_27] : memref<128x128xf32, #tpu.memory_space<vmem>>, vector<128x128xf32>
      tpu.vector_store %arg9[%c0_26, %c0_27], %43 {strides = array<i32>} : memref<128x128xf32, #tpu.memory_space<vmem>>, vector<128x128xf32>,
    } else {
    }
    %c0_i32_7 = arith.constant 0 : i32
    %16 = arith.cmpi eq, %arg1, %c0_i32_7 : i32
    %17 = arith.extui %16 : i1 to i32
    %c0_i32_8 = arith.constant 0 : i32
    %18 = arith.cmpi ne, %17, %c0_i32_8 : i32
    scf.if %18 {
      %c0_19 = arith.constant 0 : index
      %c0_20 = arith.constant 0 : index
      %37 = vector.load %arg9[%c0_19, %c0_20] : memref<128x128xf32, #tpu.memory_space<vmem>>, vector<128x128xf32>
      %c0_21 = arith.constant 0 : index
      %c0_22 = arith.constant 0 : index
      %38 = vector.load %arg10[%c0_21, %c0_22] : memref<128x128xf32, #tpu.memory_space<vmem>>, vector<128x128xf32>
      %39 = arith.select %10, %37, %38 : vector<128x128xf32>
      %40 = arith.truncf %39 : vector<128x128xf32> to vector<128x128xbf16>
      %41 = arith.index_cast %arg0 : i32 to index
      %c0_23 = arith.constant 0 : index
      %c0_24 = arith.constant 0 : index
      %42 = vector.load %arg6[%41, %c0_23, %c0_24] : memref<2x128x128xbf16, #tpu.memory_space<vmem>>, vector<1x128x128xbf16>
      %43 = vector.shape_cast %42 : vector<1x128x128xbf16> to vector<128x128xbf16>
      %cst_25 = arith.constant dense<0.000000e+00> : vector<128x128xf32>
      %44 = tpu.matmul %40, %43, %cst_25 {dimension_numbers = #tpu.dot_dimension_numbers<[1], [0], [0], [1], [0, 0, 1, 1], [], []>} : vector<128x128xbf16>, vector<128x128xbf16>, vector<128x128xf32> -> vector<128x128xf32>
      %45 = arith.truncf %44 : vector<128x128xf32> to vector<128x128xbf16>
      %c0_26 = arith.constant 0 : index
      %c0_27 = arith.constant 0 : index
      %46 = vector.load %arg11[%c0_26, %c0_27] : memref<128x128xbf16, #tpu.memory_space<vmem>>, vector<128x128xbf16>
      tpu.vector_store %arg11[%c0_26, %c0_27], %45 {strides = array<i32>} : memref<128x128xbf16, #tpu.memory_space<vmem>>, vector<128x128xbf16>,
    } else {
    }
    %c0 = arith.constant 0 : index
    %c0_9 = arith.constant 0 : index
    %19 = vector.load %arg5[%c0, %c0_9] : memref<128x128xbf16, #tpu.memory_space<vmem>>, vector<128x128xbf16>
    %c0_10 = arith.constant 0 : index
    %c0_11 = arith.constant 0 : index
    %20 = vector.load %arg11[%c0_10, %c0_11] : memref<128x128xbf16, #tpu.memory_space<vmem>>, vector<128x128xbf16>
    %cst = arith.constant dense<0.000000e+00> : vector<128x128xf32>
    %21 = tpu.matmul %19, %20, %cst {dimension_numbers = #tpu.dot_dimension_numbers<[1], [0], [0], [1], [0, 0, 1, 1], [], []>} : vector<128x128xbf16>, vector<128x128xbf16>, vector<128x128xf32> -> vector<128x128xf32>
    %22 = arith.index_cast %arg0 : i32 to index
    %c0_12 = arith.constant 0 : index
    %c0_13 = arith.constant 0 : index
    %23 = vector.load %arg7[%22, %c0_12, %c0_13] : memref<2x1x128xf32, #tpu.memory_space<vmem>>, vector<1x1x128xf32>
    %24 = vector.shape_cast %23 : vector<1x1x128xf32> to vector<1x128xf32>
    %25 = vector.broadcast %24 : vector<1x128xf32> to vector<128x128xf32>
    %26 = arith.addf %21, %25 : vector<128x128xf32>
    %cst_14 = arith.constant 0.000000e+00 : f32
    %27 = vector.broadcast %cst_14 : f32 to vector<128x128xf32>
    %28 = arith.maximumf %26, %27 : vector<128x128xf32>
    %c0_15 = arith.constant 0 : index
    %c0_16 = arith.constant 0 : index
    %29 = vector.load %arg8[%c0_15, %c0_16] : memref<128x128xf32, #tpu.memory_space<vmem>>, vector<128x128xf32>
    tpu.vector_store %arg8[%c0_15, %c0_16], %28 {strides = array<i32>} : memref<128x128xf32, #tpu.memory_space<vmem>>, vector<128x128xf32>,
    %c128_i32 = arith.constant 128 : i32
    %30 = arith.muli %arg1, %c128_i32 : i32
    %31 = tpu.assume_multiple %30, 128 : i32
    %32 = arith.extui %10 : i1 to i32
    %c0_i32_17 = arith.constant 0 : i32
    %33 = arith.cmpi ne, %32, %c0_i32_17 : i32
    scf.if %33 {
      %37 = arith.index_cast %31 : i32 to index
      %c0_19 = arith.constant 0 : index
      %38 = vector.load %arg10[%37, %c0_19] : memref<128x128xf32, #tpu.memory_space<vmem>>, vector<128x128xf32>
      tpu.vector_store %arg10[%37, %c0_19], %28 {strides = array<i32>} : memref<128x128xf32, #tpu.memory_space<vmem>>, vector<128x128xf32>,
    } else {
    }
    %true = arith.constant true
    %34 = arith.xori %10, %true : i1
    %35 = arith.extui %34 : i1 to i32
    %c0_i32_18 = arith.constant 0 : i32
    %36 = arith.cmpi ne, %35, %c0_i32_18 : i32
    scf.if %36 {
      %37 = arith.index_cast %31 : i32 to index
      %c0_19 = arith.constant 0 : index
      %38 = vector.load %arg9[%37, %c0_19] : memref<128x128xf32, #tpu.memory_space<vmem>>, vector<128x128xf32>
      tpu.vector_store %arg9[%37, %c0_19], %28 {strides = array<i32>} : memref<128x128xf32, #tpu.memory_space<vmem>>, vector<128x128xf32>,
    } else {
    }
    return
  }
  func.func @transform_0(%arg0: i32, %arg1: i32) -> (i32, i32) {
    %c0_i32 = arith.constant 0 : i32
    %c0_i32_0 = arith.constant 0 : i32
    %c0_i32_1 = arith.constant 0 : i32
    return %c0_i32, %c0_i32_0 : i32, i32
  }
  func.func @transform_1(%arg0: i32, %arg1: i32) -> (i32, i32) {
    %c0_i32 = arith.constant 0 : i32
    %c0_i32_0 = arith.constant 0 : i32
    %c0_i32_1 = arith.constant 0 : i32
    return %c0_i32, %c0_i32_0 : i32, i32
  }
  func.func @transform_2(%arg0: i32, %arg1: i32) -> (i32, i32) {
    %c0_i32 = arith.constant 0 : i32
    %c0_i32_0 = arith.constant 0 : i32
    %c0_i32_1 = arith.constant 0 : i32
    return %c0_i32, %c0_i32_0 : i32, i32
  }
  func.func @transform_3(%arg0: i32, %arg1: i32) -> (i32, i32) {
    %c0_i32 = arith.constant 0 : i32
    %c0_i32_0 = arith.constant 0 : i32
    return %arg1, %c0_i32 : i32, i32
  }
  func.func @transform_4(%arg0: i32, %arg1: i32) -> (i32, i32, i32) {
    %c0_i32 = arith.constant 0 : i32
    %c0_i32_0 = arith.constant 0 : i32
    %c0_i32_1 = arith.constant 0 : i32
    %c0_i32_2 = arith.constant 0 : i32
    return %c0_i32, %c0_i32_0, %c0_i32_1 : i32, i32, i32
  }
  func.func @transform_5(%arg0: i32, %arg1: i32) -> (i32, i32, i32) {
    %c0_i32 = arith.constant 0 : i32
    %c0_i32_0 = arith.constant 0 : i32
    %c0_i32_1 = arith.constant 0 : i32
    %c0_i32_2 = arith.constant 0 : i32
    return %c0_i32, %c0_i32_0, %c0_i32_1 : i32, i32, i32
  }
  func.func @transform_6(%arg0: i32, %arg1: i32) -> (i32, i32) {
    %c0_i32 = arith.constant 0 : i32
    %c0_i32_0 = arith.constant 0 : i32
    return %arg1, %c0_i32 : i32, i32
  }
}

module attributes {stable_mosaic.version = 11 : i64} {
  func.func @_edge_mlp_kernel(%arg0: i32, %arg1: memref<128x128xf32, #tpu.memory_space<vmem>>, %arg2: memref<128x128xbf16, #tpu.memory_space<vmem>>, %arg3: memref<1x128xf32, #tpu.memory_space<vmem>>, %arg4: memref<128x128xbf16, #tpu.memory_space<vmem>>, %arg5: memref<1x128xf32, #tpu.memory_space<vmem>>, %arg6: memref<128x128xf32, #tpu.memory_space<vmem>>) attributes {dimension_semantics = [#tpu.dimension_semantics<parallel>], iteration_bounds = array<i64: 1>, scalar_prefetch = 0 : i64, scratch_operands = 0 : i64, tpu.core_type = #tpu.core_type<tc>, window_params = [{transform_indices = @transform_0, window_bounds = array<i64: 128, 128>}, {pipeline_mode = #tpu.pipeline_mode<synchronous>, transform_indices = @transform_1, window_bounds = array<i64: 128, 128>}, {pipeline_mode = #tpu.pipeline_mode<synchronous>, transform_indices = @transform_2, window_bounds = array<i64: 1, 128>}, {pipeline_mode = #tpu.pipeline_mode<synchronous>, transform_indices = @transform_3, window_bounds = array<i64: 128, 128>}, {pipeline_mode = #tpu.pipeline_mode<synchronous>, transform_indices = @transform_4, window_bounds = array<i64: 1, 128>}, {transform_indices = @transform_5, window_bounds = array<i64: 128, 128>}]} {
    %c0 = arith.constant 0 : index
    %c0_0 = arith.constant 0 : index
    %0 = vector.load %arg1[%c0, %c0_0] : memref<128x128xf32, #tpu.memory_space<vmem>>, vector<128x128xf32>
    %1 = arith.truncf %0 : vector<128x128xf32> to vector<128x128xbf16>
    %c0_1 = arith.constant 0 : index
    %c0_2 = arith.constant 0 : index
    %2 = vector.load %arg2[%c0_1, %c0_2] : memref<128x128xbf16, #tpu.memory_space<vmem>>, vector<128x128xbf16>
    %cst = arith.constant dense<0.000000e+00> : vector<128x128xf32>
    %3 = tpu.matmul %1, %2, %cst {dimension_numbers = #tpu.dot_dimension_numbers<[1], [0], [0], [1], [0, 0, 1, 1], [], []>} : vector<128x128xbf16>, vector<128x128xbf16>, vector<128x128xf32> -> vector<128x128xf32>
    %c0_3 = arith.constant 0 : index
    %c0_4 = arith.constant 0 : index
    %4 = vector.load %arg3[%c0_3, %c0_4] : memref<1x128xf32, #tpu.memory_space<vmem>>, vector<1x128xf32>
    %5 = vector.broadcast %4 : vector<1x128xf32> to vector<128x128xf32>
    %6 = arith.addf %3, %5 : vector<128x128xf32>
    %cst_5 = arith.constant 0.000000e+00 : f32
    %7 = vector.broadcast %cst_5 : f32 to vector<128x128xf32>
    %8 = arith.maximumf %6, %7 : vector<128x128xf32>
    %9 = arith.truncf %8 : vector<128x128xf32> to vector<128x128xbf16>
    %c0_6 = arith.constant 0 : index
    %c0_7 = arith.constant 0 : index
    %10 = vector.load %arg4[%c0_6, %c0_7] : memref<128x128xbf16, #tpu.memory_space<vmem>>, vector<128x128xbf16>
    %cst_8 = arith.constant dense<0.000000e+00> : vector<128x128xf32>
    %11 = tpu.matmul %9, %10, %cst_8 {dimension_numbers = #tpu.dot_dimension_numbers<[1], [0], [0], [1], [0, 0, 1, 1], [], []>} : vector<128x128xbf16>, vector<128x128xbf16>, vector<128x128xf32> -> vector<128x128xf32>
    %c0_9 = arith.constant 0 : index
    %c0_10 = arith.constant 0 : index
    %12 = vector.load %arg5[%c0_9, %c0_10] : memref<1x128xf32, #tpu.memory_space<vmem>>, vector<1x128xf32>
    %13 = vector.broadcast %12 : vector<1x128xf32> to vector<128x128xf32>
    %14 = arith.addf %11, %13 : vector<128x128xf32>
    %c0_11 = arith.constant 0 : index
    %c0_12 = arith.constant 0 : index
    %15 = vector.load %arg6[%c0_11, %c0_12] : memref<128x128xf32, #tpu.memory_space<vmem>>, vector<128x128xf32>
    tpu.vector_store %arg6[%c0_11, %c0_12], %14 {strides = array<i32>} : memref<128x128xf32, #tpu.memory_space<vmem>>, vector<128x128xf32>,
    return
  }
  func.func @transform_0(%arg0: i32) -> (i32, i32) {
    %c0_i32 = arith.constant 0 : i32
    %c0_i32_0 = arith.constant 0 : i32
    return %arg0, %c0_i32 : i32, i32
  }
  func.func @transform_1(%arg0: i32) -> (i32, i32) {
    %c0_i32 = arith.constant 0 : i32
    %c0_i32_0 = arith.constant 0 : i32
    %c0_i32_1 = arith.constant 0 : i32
    return %c0_i32, %c0_i32_0 : i32, i32
  }
  func.func @transform_2(%arg0: i32) -> (i32, i32) {
    %c0_i32 = arith.constant 0 : i32
    %c0_i32_0 = arith.constant 0 : i32
    %c0_i32_1 = arith.constant 0 : i32
    return %c0_i32, %c0_i32_0 : i32, i32
  }
  func.func @transform_3(%arg0: i32) -> (i32, i32) {
    %c0_i32 = arith.constant 0 : i32
    %c0_i32_0 = arith.constant 0 : i32
    %c0_i32_1 = arith.constant 0 : i32
    return %c0_i32, %c0_i32_0 : i32, i32
  }
  func.func @transform_4(%arg0: i32) -> (i32, i32) {
    %c0_i32 = arith.constant 0 : i32
    %c0_i32_0 = arith.constant 0 : i32
    %c0_i32_1 = arith.constant 0 : i32
    return %c0_i32, %c0_i32_0 : i32, i32
  }
  func.func @transform_5(%arg0: i32) -> (i32, i32) {
    %c0_i32 = arith.constant 0 : i32
    %c0_i32_0 = arith.constant 0 : i32
    return %arg0, %c0_i32 : i32, i32
  }
}

module attributes {stable_mosaic.version = 11 : i64} {
  func.func @_score_predictor_kernel(%arg0: i32, %arg1: memref<128x128xf32, #tpu.memory_space<vmem>>, %arg2: memref<128x128xf32, #tpu.memory_space<vmem>>, %arg3: memref<128x128xf32, #tpu.memory_space<vmem>>, %arg4: memref<128x128xbf16, #tpu.memory_space<vmem>>, %arg5: memref<128x128xbf16, #tpu.memory_space<vmem>>, %arg6: memref<128x128xbf16, #tpu.memory_space<vmem>>, %arg7: memref<1x128xf32, #tpu.memory_space<vmem>>, %arg8: memref<128x128xbf16, #tpu.memory_space<vmem>>, %arg9: memref<1x128xf32, #tpu.memory_space<vmem>>, %arg10: memref<128x128xf32, #tpu.memory_space<vmem>>) attributes {dimension_semantics = [#tpu.dimension_semantics<parallel>], iteration_bounds = array<i64: 1>, scalar_prefetch = 0 : i64, scratch_operands = 0 : i64, tpu.core_type = #tpu.core_type<tc>, window_params = [{transform_indices = @transform_0, window_bounds = array<i64: 128, 128>}, {transform_indices = @transform_1, window_bounds = array<i64: 128, 128>}, {transform_indices = @transform_2, window_bounds = array<i64: 128, 128>}, {pipeline_mode = #tpu.pipeline_mode<synchronous>, transform_indices = @transform_3, window_bounds = array<i64: 128, 128>}, {pipeline_mode = #tpu.pipeline_mode<synchronous>, transform_indices = @transform_4, window_bounds = array<i64: 128, 128>}, {pipeline_mode = #tpu.pipeline_mode<synchronous>, transform_indices = @transform_5, window_bounds = array<i64: 128, 128>}, {pipeline_mode = #tpu.pipeline_mode<synchronous>, transform_indices = @transform_6, window_bounds = array<i64: 1, 128>}, {pipeline_mode = #tpu.pipeline_mode<synchronous>, transform_indices = @transform_7, window_bounds = array<i64: 128, 128>}, {pipeline_mode = #tpu.pipeline_mode<synchronous>, transform_indices = @transform_8, window_bounds = array<i64: 1, 128>}, {transform_indices = @transform_9, window_bounds = array<i64: 128, 128>}]} {
    %c0 = arith.constant 0 : index
    %c0_0 = arith.constant 0 : index
    %0 = vector.load %arg1[%c0, %c0_0] : memref<128x128xf32, #tpu.memory_space<vmem>>, vector<128x128xf32>
    %1 = arith.truncf %0 : vector<128x128xf32> to vector<128x128xbf16>
    %c0_1 = arith.constant 0 : index
    %c0_2 = arith.constant 0 : index
    %2 = vector.load %arg4[%c0_1, %c0_2] : memref<128x128xbf16, #tpu.memory_space<vmem>>, vector<128x128xbf16>
    %cst = arith.constant dense<0.000000e+00> : vector<128x128xf32>
    %3 = tpu.matmul %1, %2, %cst {dimension_numbers = #tpu.dot_dimension_numbers<[1], [0], [0], [1], [0, 0, 1, 1], [], []>} : vector<128x128xbf16>, vector<128x128xbf16>, vector<128x128xf32> -> vector<128x128xf32>
    %c0_3 = arith.constant 0 : index
    %c0_4 = arith.constant 0 : index
    %4 = vector.load %arg2[%c0_3, %c0_4] : memref<128x128xf32, #tpu.memory_space<vmem>>, vector<128x128xf32>
    %5 = arith.truncf %4 : vector<128x128xf32> to vector<128x128xbf16>
    %c0_5 = arith.constant 0 : index
    %c0_6 = arith.constant 0 : index
    %6 = vector.load %arg5[%c0_5, %c0_6] : memref<128x128xbf16, #tpu.memory_space<vmem>>, vector<128x128xbf16>
    %cst_7 = arith.constant dense<0.000000e+00> : vector<128x128xf32>
    %7 = tpu.matmul %5, %6, %cst_7 {dimension_numbers = #tpu.dot_dimension_numbers<[1], [0], [0], [1], [0, 0, 1, 1], [], []>} : vector<128x128xbf16>, vector<128x128xbf16>, vector<128x128xf32> -> vector<128x128xf32>
    %8 = arith.addf %3, %7 : vector<128x128xf32>
    %c0_8 = arith.constant 0 : index
    %c0_9 = arith.constant 0 : index
    %9 = vector.load %arg3[%c0_8, %c0_9] : memref<128x128xf32, #tpu.memory_space<vmem>>, vector<128x128xf32>
    %10 = arith.truncf %9 : vector<128x128xf32> to vector<128x128xbf16>
    %c0_10 = arith.constant 0 : index
    %c0_11 = arith.constant 0 : index
    %11 = vector.load %arg6[%c0_10, %c0_11] : memref<128x128xbf16, #tpu.memory_space<vmem>>, vector<128x128xbf16>
    %cst_12 = arith.constant dense<0.000000e+00> : vector<128x128xf32>
    %12 = tpu.matmul %10, %11, %cst_12 {dimension_numbers = #tpu.dot_dimension_numbers<[1], [0], [0], [1], [0, 0, 1, 1], [], []>} : vector<128x128xbf16>, vector<128x128xbf16>, vector<128x128xf32> -> vector<128x128xf32>
    %13 = arith.addf %8, %12 : vector<128x128xf32>
    %c0_13 = arith.constant 0 : index
    %c0_14 = arith.constant 0 : index
    %14 = vector.load %arg7[%c0_13, %c0_14] : memref<1x128xf32, #tpu.memory_space<vmem>>, vector<1x128xf32>
    %15 = vector.broadcast %14 : vector<1x128xf32> to vector<128x128xf32>
    %16 = arith.addf %13, %15 : vector<128x128xf32>
    %cst_15 = arith.constant 0.000000e+00 : f32
    %17 = vector.broadcast %cst_15 : f32 to vector<128x128xf32>
    %18 = arith.maximumf %16, %17 : vector<128x128xf32>
    %19 = arith.truncf %18 : vector<128x128xf32> to vector<128x128xbf16>
    %c0_16 = arith.constant 0 : index
    %c0_17 = arith.constant 0 : index
    %20 = vector.load %arg8[%c0_16, %c0_17] : memref<128x128xbf16, #tpu.memory_space<vmem>>, vector<128x128xbf16>
    %cst_18 = arith.constant dense<0.000000e+00> : vector<128x128xf32>
    %21 = tpu.matmul %19, %20, %cst_18 {dimension_numbers = #tpu.dot_dimension_numbers<[1], [0], [0], [1], [0, 0, 1, 1], [], []>} : vector<128x128xbf16>, vector<128x128xbf16>, vector<128x128xf32> -> vector<128x128xf32>
    %c0_19 = arith.constant 0 : index
    %c0_20 = arith.constant 0 : index
    %22 = vector.load %arg9[%c0_19, %c0_20] : memref<1x128xf32, #tpu.memory_space<vmem>>, vector<1x128xf32>
    %23 = vector.broadcast %22 : vector<1x128xf32> to vector<128x128xf32>
    %24 = arith.addf %21, %23 : vector<128x128xf32>
    %c0_21 = arith.constant 0 : index
    %c0_22 = arith.constant 0 : index
    %25 = vector.load %arg10[%c0_21, %c0_22] : memref<128x128xf32, #tpu.memory_space<vmem>>, vector<128x128xf32>
    tpu.vector_store %arg10[%c0_21, %c0_22], %24 {strides = array<i32>} : memref<128x128xf32, #tpu.memory_space<vmem>>, vector<128x128xf32>,
    return
  }
  func.func @transform_0(%arg0: i32) -> (i32, i32) {
    %c0_i32 = arith.constant 0 : i32
    %c0_i32_0 = arith.constant 0 : i32
    return %arg0, %c0_i32 : i32, i32
  }
  func.func @transform_1(%arg0: i32) -> (i32, i32) {
    %c0_i32 = arith.constant 0 : i32
    %c0_i32_0 = arith.constant 0 : i32
    return %arg0, %c0_i32 : i32, i32
  }
  func.func @transform_2(%arg0: i32) -> (i32, i32) {
    %c0_i32 = arith.constant 0 : i32
    %c0_i32_0 = arith.constant 0 : i32
    return %arg0, %c0_i32 : i32, i32
  }
  func.func @transform_3(%arg0: i32) -> (i32, i32) {
    %c0_i32 = arith.constant 0 : i32
    %c0_i32_0 = arith.constant 0 : i32
    %c0_i32_1 = arith.constant 0 : i32
    return %c0_i32, %c0_i32_0 : i32, i32
  }
  func.func @transform_4(%arg0: i32) -> (i32, i32) {
    %c0_i32 = arith.constant 0 : i32
    %c0_i32_0 = arith.constant 0 : i32
    %c0_i32_1 = arith.constant 0 : i32
    return %c0_i32, %c0_i32_0 : i32, i32
  }
  func.func @transform_5(%arg0: i32) -> (i32, i32) {
    %c0_i32 = arith.constant 0 : i32
    %c0_i32_0 = arith.constant 0 : i32
    %c0_i32_1 = arith.constant 0 : i32
    return %c0_i32, %c0_i32_0 : i32, i32
  }
  func.func @transform_6(%arg0: i32) -> (i32, i32) {
    %c0_i32 = arith.constant 0 : i32
    %c0_i32_0 = arith.constant 0 : i32
    %c0_i32_1 = arith.constant 0 : i32
    return %c0_i32, %c0_i32_0 : i32, i32
  }
  func.func @transform_7(%arg0: i32) -> (i32, i32) {
    %c0_i32 = arith.constant 0 : i32
    %c0_i32_0 = arith.constant 0 : i32
    %c0_i32_1 = arith.constant 0 : i32
    return %c0_i32, %c0_i32_0 : i32, i32
  }
  func.func @transform_8(%arg0: i32) -> (i32, i32) {
    %c0_i32 = arith.constant 0 : i32
    %c0_i32_0 = arith.constant 0 : i32
    %c0_i32_1 = arith.constant 0 : i32
    return %c0_i32, %c0_i32_0 : i32, i32
  }
  func.func @transform_9(%arg0: i32) -> (i32, i32) {
    %c0_i32 = arith.constant 0 : i32
    %c0_i32_0 = arith.constant 0 : i32
    return %arg0, %c0_i32 : i32, i32
  }
}

</mosaic_0001>

<llo_original>
// kernel: pathnn_model_forward.4
$region0: #{pathnn_model_forward.4}
  #allocation0 [shape = 'u32[]', space=smem, size = 0x4, offset = 0x4, fixed_abs, tag = 'smem constant byte address 0x4 - core index']
  #allocation1 [shape = 'u32[72,128]{1,0:T(1,128)}', space=vmem, size = 0x9000, scoped, tag = 'internal scratch']
  %s0 = inlined_call_operand.vmem [shape: f32[128,128], index: 0, kind: input, shape index: {}]
  %s1 = inlined_call_operand.vmem [shape: bf16[128,128], index: 1, kind: input, shape index: {}]
  %s2 = inlined_call_operand.vmem [shape: f32[1,128], index: 2, kind: input, shape index: {}]
  %s3 = inlined_call_operand.vmem [shape: bf16[128,128], index: 3, kind: input, shape index: {}]
  %s4 = inlined_call_operand.vmem [shape: f32[1,128], index: 4, kind: input, shape index: {}]
  %s5 = inlined_call_operand.vmem [shape: f32[128,128], index: 5, kind: output, shape index: {}]
  %s6 = sld [smem:[#allocation0]]
  $region30: #{pathnn_model_forward.4} parent=0
    _
  %s8 = ssub.s32 1, %s6
  %s9 = scalar_select 0, %s8, %s6
  // Predicated region
  $region2: #{pathnn_model_forward.4} parent=0 // pred_check
    _
  $region3: #{pathnn_model_forward.4} parent=0 // pred_check_branch
    %11 = sbr.rel (0) target = $region5
  $region4: #{pathnn_model_forward.4} parent=0 // pred_region
    _
  $region5: #{pathnn_model_forward.4} parent=0 // pred_fallthru
    _
  // Predicated region
  $region6: #{pathnn_model_forward.4} parent=0 // pred_check
    _
  $region7: #{pathnn_model_forward.4} parent=0 // pred_check_branch
    %13 = sbr.rel (0) target = $region9
  $region8: #{pathnn_model_forward.4} parent=0 // pred_region
    _
  $region9: #{pathnn_model_forward.4} parent=0 // pred_fallthru
    _
  // Predicated region
  $region10: #{pathnn_model_forward.4} parent=0 // pred_check
    _
  $region11: #{pathnn_model_forward.4} parent=0 // pred_check_branch
    %15 = sbr.rel (0) target = $region13
  $region12: #{pathnn_model_forward.4} parent=0 // pred_region
    _
  $region13: #{pathnn_model_forward.4} parent=0 // pred_fallthru
    _
  // Predicated region
  $region14: #{pathnn_model_forward.4} parent=0 // pred_check
    _
  $region15: #{pathnn_model_forward.4} parent=0 // pred_check_branch
    %17 = sbr.rel (0) target = $region17
  $region16: #{pathnn_model_forward.4} parent=0 // pred_region
    _
  $region17: #{pathnn_model_forward.4} parent=0 // pred_fallthru
    _
  // Predicated region
  $region18: #{pathnn_model_forward.4} parent=0 // pred_check
    _
  $region19: #{pathnn_model_forward.4} parent=0 // pred_check_branch
    %19 = sbr.rel (0) target = $region21
  $region20: #{pathnn_model_forward.4} parent=0 // pred_region
    _
  $region21: #{pathnn_model_forward.4} parent=0 // pred_fallthru
    _
  %v20 = vld [vmem:[%s0] sm:$0xff]
  %v21 = vld [vmem:[%s0 + $0x8] sm:$0xff]
  %v22 = vld [vmem:[%s0 + $0x10] sm:$0xff]
  %v23 = vld [vmem:[%s0 + $0x18] sm:$0xff]
  %v24 = vld [vmem:[%s0 + $0x20] sm:$0xff]
  %v25 = vld [vmem:[%s0 + $0x28] sm:$0xff]
  %v26 = vld [vmem:[%s0 + $0x30] sm:$0xff]
  %v27 = vld [vmem:[%s0 + $0x38] sm:$0xff]
  %v28 = vld [vmem:[%s0 + $0x40] sm:$0xff]
  %v29 = vld [vmem:[%s0 + $0x48] sm:$0xff]
  %v30 = vld [vmem:[%s0 + $0x50] sm:$0xff]
  %v31 = vld [vmem:[%s0 + $0x58] sm:$0xff]
  %v32 = vld [vmem:[%s0 + $0x60] sm:$0xff]
  %v33 = vld [vmem:[%s0 + $0x68] sm:$0xff]
  %v34 = vld [vmem:[%s0 + $0x70] sm:$0xff]
  %v35 = vld [vmem:[%s0 + $0x78] sm:$0xff]
  %v36 = vpack.c.bf16 %v21, %v20
  %v37 = vpack.c.bf16 %v23, %v22
  %v38 = vpack.c.bf16 %v25, %v24
  %v39 = vpack.c.bf16 %v27, %v26
  %v40 = vpack.c.bf16 %v29, %v28
  %v41 = vpack.c.bf16 %v31, %v30
  %v42 = vpack.c.bf16 %v33, %v32
  %v43 = vpack.c.bf16 %v35, %v34
  %v44 = vld [vmem:[%s1] sm:$0xf]
  %v45 = vld [vmem:[%s1 + $0x4] sm:$0xf]
  %v46 = vld [vmem:[%s1 + $0x8] sm:$0xf]
  %v47 = vld [vmem:[%s1 + $0xc] sm:$0xf]
  %v48 = vld [vmem:[%s1 + $0x10] sm:$0xf]
  %v49 = vld [vmem:[%s1 + $0x14] sm:$0xf]
  %v50 = vld [vmem:[%s1 + $0x18] sm:$0xf]
  %v51 = vld [vmem:[%s1 + $0x1c] sm:$0xf]
  %v52 = vld [vmem:[%s1 + $0x20] sm:$0xf]
  %v53 = vld [vmem:[%s1 + $0x24] sm:$0xf]
  %v54 = vld [vmem:[%s1 + $0x28] sm:$0xf]
  %v55 = vld [vmem:[%s1 + $0x2c] sm:$0xf]
  %v56 = vld [vmem:[%s1 + $0x30] sm:$0xf]
  %v57 = vld [vmem:[%s1 + $0x34] sm:$0xf]
  %v58 = vld [vmem:[%s1 + $0x38] sm:$0xf]
  %v59 = vld [vmem:[%s1 + $0x3c] sm:$0xf]
  %v60 = vld [vmem:[%s2] sm:$0x1]
  %v62 = vperm.slane %v60, 0
  %v80 = vunpack.c.l.b16 %v44
  %v81 = vunpack.c.l.b16 %v45
  %v82 = vunpack.c.l.b16 %v46
  %v83 = vunpack.c.l.b16 %v47
  %v84 = vunpack.c.l.b16 %v48
  %v85 = vunpack.c.l.b16 %v49
  %v86 = vunpack.c.l.b16 %v50
  %v87 = vunpack.c.l.b16 %v51
  %v88 = vunpack.c.l.b16 %v52
  %v89 = vunpack.c.l.b16 %v53
  %v90 = vunpack.c.l.b16 %v54
  %v91 = vunpack.c.l.b16 %v55
  %v92 = vunpack.c.l.b16 %v56
  %v93 = vunpack.c.l.b16 %v57
  %v94 = vunpack.c.l.b16 %v58
  %v95 = vunpack.c.l.b16 %v59
  %v96 = vpack.c.b16 %v81, %v80
  %v97 = vpack.c.b16 %v83, %v82
  %v98 = vpack.c.b16 %v85, %v84
  %v99 = vpack.c.b16 %v87, %v86
  %v100 = vpack.c.b16 %v89, %v88
  %v101 = vpack.c.b16 %v91, %v90
  %v102 = vpack.c.b16 %v93, %v92
  %v103 = vpack.c.b16 %v95, %v94
  %112 = vmatpush.bf16.msra.mxu0 %v103
  %113 = vmatpush.bf16.msra.mxu0 %v102
  %114 = vmatpush.bf16.msra.mxu0 %v101
  %115 = vmatpush.bf16.msra.mxu0 %v100
  %116 = vmatpush.bf16.msra.mxu0 %v99
  %117 = vmatpush.bf16.msra.mxu0 %v98
  %118 = vmatpush.bf16.msra.mxu0 %v97
  %119 = vmatpush.bf16.msra.mxu0 %v96
  %120 = vmatmul.bf16.gmra.mxu0 %v36
  %v121 = vpop.f32.mrf.mxu0
  %v122 = vadd.f32 %v62, %v121
  %v123 = vpop.f32.mrf.mxu0
  %v124 = vadd.f32 %v62, %v123
  %125 = vmatmul.bf16.gmra.mxu0 %v37
  %v126 = vpop.f32.mrf.mxu0
  %v127 = vadd.f32 %v62, %v126
  %v128 = vpop.f32.mrf.mxu0
  %v129 = vadd.f32 %v62, %v128
  %130 = vmatmul.bf16.gmra.mxu0 %v38
  %v131 = vpop.f32.mrf.mxu0
  %v132 = vadd.f32 %v62, %v131
  %v133 = vpop.f32.mrf.mxu0
  %v134 = vadd.f32 %v62, %v133
  %135 = vmatmul.bf16.gmra.mxu0 %v39
  %v136 = vpop.f32.mrf.mxu0
  %v137 = vadd.f32 %v62, %v136
  %v138 = vpop.f32.mrf.mxu0
  %v139 = vadd.f32 %v62, %v138
  %140 = vmatmul.bf16.gmra.mxu0 %v40
  %v141 = vpop.f32.mrf.mxu0
  %v142 = vadd.f32 %v62, %v141
  %v143 = vpop.f32.mrf.mxu0
  %v144 = vadd.f32 %v62, %v143
  %145 = vmatmul.bf16.gmra.mxu0 %v41
  %v146 = vpop.f32.mrf.mxu0
  %v147 = vadd.f32 %v62, %v146
  %v148 = vpop.f32.mrf.mxu0
  %v149 = vadd.f32 %v62, %v148
  %150 = vmatmul.bf16.gmra.mxu0 %v42
  %v151 = vpop.f32.mrf.mxu0
  %v152 = vadd.f32 %v62, %v151
  %v153 = vpop.f32.mrf.mxu0
  %v154 = vadd.f32 %v62, %v153
  %155 = vmatmul.bf16.gmra.mxu0 %v43
  %v156 = vpop.f32.mrf.mxu0
  %v157 = vadd.f32 %v62, %v156
  %v158 = vpop.f32.mrf.mxu0
  %v159 = vadd.f32 %v62, %v158
  %160 = vdwg.mxu0
  %v161 = vmax.f32 %v122, 0.0
  %v162 = vmax.f32 %v124, 0.0
  %v163 = vmax.f32 %v127, 0.0
  %v164 = vmax.f32 %v129, 0.0
  %v165 = vmax.f32 %v132, 0.0
  %v166 = vmax.f32 %v134, 0.0
  %v167 = vmax.f32 %v137, 0.0
  %v168 = vmax.f32 %v139, 0.0
  %v169 = vmax.f32 %v142, 0.0
  %v170 = vmax.f32 %v144, 0.0
  %v171 = vmax.f32 %v147, 0.0
  %v172 = vmax.f32 %v149, 0.0
  %v173 = vmax.f32 %v152, 0.0
  %v174 = vmax.f32 %v154, 0.0
  %v175 = vmax.f32 %v157, 0.0
  %v176 = vmax.f32 %v159, 0.0
  %v177 = vpack.c.bf16 %v162, %v161
  %v178 = vpack.c.bf16 %v164, %v163
  %v179 = vpack.c.bf16 %v166, %v165
  %v180 = vpack.c.bf16 %v168, %v167
  %v181 = vpack.c.bf16 %v170, %v169
  %v182 = vpack.c.bf16 %v172, %v171
  %v183 = vpack.c.bf16 %v174, %v173
  %v184 = vpack.c.bf16 %v176, %v175
  %v185 = vld [vmem:[%s3] sm:$0xf]
  %v186 = vld [vmem:[%s3 + $0x4] sm:$0xf]
  %v187 = vld [vmem:[%s3 + $0x8] sm:$0xf]
  %v188 = vld [vmem:[%s3 + $0xc] sm:$0xf]
  %v189 = vld [vmem:[%s3 + $0x10] sm:$0xf]
  %v190 = vld [vmem:[%s3 + $0x14] sm:$0xf]
  %v191 = vld [vmem:[%s3 + $0x18] sm:$0xf]
  %v192 = vld [vmem:[%s3 + $0x1c] sm:$0xf]
  %v193 = vld [vmem:[%s3 + $0x20] sm:$0xf]
  %v194 = vld [vmem:[%s3 + $0x24] sm:$0xf]
  %v195 = vld [vmem:[%s3 + $0x28] sm:$0xf]
  %v196 = vld [vmem:[%s3 + $0x2c] sm:$0xf]
  %v197 = vld [vmem:[%s3 + $0x30] sm:$0xf]
  %v198 = vld [vmem:[%s3 + $0x34] sm:$0xf]
  %v199 = vld [vmem:[%s3 + $0x38] sm:$0xf]
  %v200 = vld [vmem:[%s3 + $0x3c] sm:$0xf]
  %v201 = vld [vmem:[%s4] sm:$0x1]
  %v203 = vperm.slane %v201, 0
  %v221 = vunpack.c.l.b16 %v185
  %v222 = vunpack.c.l.b16 %v186
  %v223 = vunpack.c.l.b16 %v187
  %v224 = vunpack.c.l.b16 %v188
  %v225 = vunpack.c.l.b16 %v189
  %v226 = vunpack.c.l.b16 %v190
  %v227 = vunpack.c.l.b16 %v191
  %v228 = vunpack.c.l.b16 %v192
  %v229 = vunpack.c.l.b16 %v193
  %v230 = vunpack.c.l.b16 %v194
  %v231 = vunpack.c.l.b16 %v195
  %v232 = vunpack.c.l.b16 %v196
  %v233 = vunpack.c.l.b16 %v197
  %v234 = vunpack.c.l.b16 %v198
  %v235 = vunpack.c.l.b16 %v199
  %v236 = vunpack.c.l.b16 %v200
  %v237 = vpack.c.b16 %v222, %v221
  %v238 = vpack.c.b16 %v224, %v223
  %v239 = vpack.c.b16 %v226, %v225
  %v240 = vpack.c.b16 %v228, %v227
  %v241 = vpack.c.b16 %v230, %v229
  %v242 = vpack.c.b16 %v232, %v231
  %v243 = vpack.c.b16 %v234, %v233
  %v244 = vpack.c.b16 %v236, %v235
  %253 = vmatpush.bf16.msra.mxu0 %v244
  %254 = vmatpush.bf16.msra.mxu0 %v243
  %255 = vmatpush.bf16.msra.mxu0 %v242
  %256 = vmatpush.bf16.msra.mxu0 %v241
  %257 = vmatpush.bf16.msra.mxu0 %v240
  %258 = vmatpush.bf16.msra.mxu0 %v239
  %259 = vmatpush.bf16.msra.mxu0 %v238
  %260 = vmatpush.bf16.msra.mxu0 %v237
  %261 = vmatmul.bf16.gmra.mxu0 %v177
  %v262 = vpop.f32.mrf.mxu0
  %v263 = vadd.f32 %v203, %v262
  %v264 = vpop.f32.mrf.mxu0
  %v265 = vadd.f32 %v203, %v264
  %266 = vmatmul.bf16.gmra.mxu0 %v178
  %v267 = vpop.f32.mrf.mxu0
  %v268 = vadd.f32 %v203, %v267
  %v269 = vpop.f32.mrf.mxu0
  %v270 = vadd.f32 %v203, %v269
  %271 = vmatmul.bf16.gmra.mxu0 %v179
  %v272 = vpop.f32.mrf.mxu0
  %v273 = vadd.f32 %v203, %v272
  %v274 = vpop.f32.mrf.mxu0
  %v275 = vadd.f32 %v203, %v274
  %276 = vmatmul.bf16.gmra.mxu0 %v180
  %v277 = vpop.f32.mrf.mxu0
  %v278 = vadd.f32 %v203, %v277
  %v279 = vpop.f32.mrf.mxu0
  %v280 = vadd.f32 %v203, %v279
  %281 = vmatmul.bf16.gmra.mxu0 %v181
  %v282 = vpop.f32.mrf.mxu0
  %v283 = vadd.f32 %v203, %v282
  %v284 = vpop.f32.mrf.mxu0
  %v285 = vadd.f32 %v203, %v284
  %286 = vmatmul.bf16.gmra.mxu0 %v182
  %v287 = vpop.f32.mrf.mxu0
  %v288 = vadd.f32 %v203, %v287
  %v289 = vpop.f32.mrf.mxu0
  %v290 = vadd.f32 %v203, %v289
  %291 = vmatmul.bf16.gmra.mxu0 %v183
  %v292 = vpop.f32.mrf.mxu0
  %v293 = vadd.f32 %v203, %v292
  %v294 = vpop.f32.mrf.mxu0
  %v295 = vadd.f32 %v203, %v294
  %296 = vmatmul.bf16.gmra.mxu0 %v184
  %v297 = vpop.f32.mrf.mxu0
  %v298 = vadd.f32 %v203, %v297
  %v299 = vpop.f32.mrf.mxu0
  %v300 = vadd.f32 %v203, %v299
  %301 = vdwg.mxu0
  %302 = vst [vmem:[%s5] sm:$0xff] %v263
  %303 = vst [vmem:[%s5 + $0x8] sm:$0xff] %v265
  %304 = vst [vmem:[%s5 + $0x10] sm:$0xff] %v268
  %305 = vst [vmem:[%s5 + $0x18] sm:$0xff] %v270
  %306 = vst [vmem:[%s5 + $0x20] sm:$0xff] %v273
  %307 = vst [vmem:[%s5 + $0x28] sm:$0xff] %v275
  %308 = vst [vmem:[%s5 + $0x30] sm:$0xff] %v278
  %309 = vst [vmem:[%s5 + $0x38] sm:$0xff] %v280
  %310 = vst [vmem:[%s5 + $0x40] sm:$0xff] %v283
  %311 = vst [vmem:[%s5 + $0x48] sm:$0xff] %v285
  %312 = vst [vmem:[%s5 + $0x50] sm:$0xff] %v288
  %313 = vst [vmem:[%s5 + $0x58] sm:$0xff] %v290
  %314 = vst [vmem:[%s5 + $0x60] sm:$0xff] %v293
  %315 = vst [vmem:[%s5 + $0x68] sm:$0xff] %v295
  %316 = vst [vmem:[%s5 + $0x70] sm:$0xff] %v298
  %317 = vst [vmem:[%s5 + $0x78] sm:$0xff] %v300
  // Predicated region
  $region22: #{pathnn_model_forward.4} parent=0 // pred_check
    _
  $region23: #{pathnn_model_forward.4} parent=0 // pred_check_branch
    %319 = sbr.rel (0) target = $region25
  $region24: #{pathnn_model_forward.4} parent=0 // pred_region
    _
  $region25: #{pathnn_model_forward.4} parent=0 // pred_fallthru
    _
  // Predicated region
  $region26: #{pathnn_model_forward.4} parent=0 // pred_check
    _
  $region27: #{pathnn_model_forward.4} parent=0 // pred_check_branch
    %321 = sbr.rel (0) target = $region29
  $region28: #{pathnn_model_forward.4} parent=0 // pred_region
    _
  $region29: #{pathnn_model_forward.4} parent=0 // pred_fallthru
    _

// kernel: pathnn_model_forward.3
$region0: #{pathnn_model_forward.3}
  #allocation0 [shape = 'u32[]', space=smem, size = 0x4, offset = 0x4, fixed_abs, tag = 'smem constant byte address 0x4 - core index']
  #allocation1 [shape = 'u32[72,128]{1,0:T(1,128)}', space=vmem, size = 0x9000, scoped, tag = 'internal scratch']
  #allocation2 [shape = 'f32[128,128]{1,0:T(8,128)}', space=vmem, size = 0x10000, scoped, tag = 'scratch operand']
  #allocation3 [shape = 'f32[128,128]{1,0:T(8,128)}', space=vmem, size = 0x10000, scoped, tag = 'scratch operand']
  #allocation4 [shape = 'bf16[128,128]{1,0:T(8,128)(2,1)}', space=vmem, size = 0x8000, scoped, tag = 'scratch operand']
  %s0 = inlined_call_operand.vmem [shape: f32[128,128], index: 0, kind: input, shape index: {}]
  %s1 = inlined_call_operand.vmem [shape: bf16[128,128], index: 1, kind: input, shape index: {}]
  %s2 = inlined_call_operand.vmem [shape: f32[1,128], index: 2, kind: input, shape index: {}]
  %s3 = inlined_call_operand.vmem [shape: bf16[128,128], index: 3, kind: input, shape index: {}]
  %s4 = inlined_call_operand.vmem [shape: bf16[2,128,128], index: 4, kind: input, shape index: {}]
  %s5 = inlined_call_operand.vmem [shape: f32[2,1,128], index: 5, kind: input, shape index: {}]
  %s6 = inlined_call_operand.vmem [shape: f32[128,128], index: 6, kind: output, shape index: {}]
  %s7 = sld [smem:[#allocation0]]
  $region73: #{pathnn_model_forward.3} parent=0
    _
  %s9 = ssub.s32 1, %s7
  %s10 = scalar_select 0, %s9, %s7
  loop: start=0, step=1, limit=4
  $region2: #{pathnn_model_forward.3} parent=0 // loop_pre_header
    _
  $region3: #{pathnn_model_forward.3} parent=0 // loop_header
    %s12 = sphi 0, %s16
    %p13 = scmp.ge.s32.totalorder %s12, 4
    %s19 = sphi 0, %s31
    %s20 = sphi 0, %s27
    %s21 = sphi 0, %s19
    %s22 = sphi 0, %s20
    %s23 = sphi 0, %s21
    %s24 = sphi 0, %s22
    %s32 = sphi 0, %s32
    %s34 = sphi 0, %s32
    %s35 = sphi 0, %s34
    %s49 = sphi 0, %s35
    %s53 = sphi 0, %s53
    %s55 = sphi 0, %s53
    %s56 = sphi 0, %s55
    %s70 = sphi 0, %s56
    %s74 = sphi 0, %s74
    %s76 = sphi 0, %s74
    %s77 = sphi 0, %s76
    %s91 = sphi 0, %s77
    %s97 = sphi 0, %s99
    %s100 = sphi 0, %s97
    %s101 = sphi 0, %s100
    %s117 = sphi 0, %s101
    %s121 = sphi 0, %s121
    %s123 = sphi 0, %s121
    %s124 = sphi 0, %s123
    %s138 = sphi 0, %s124
    %s142 = sphi 0, %s142
    %s144 = sphi 0, %s142
    %s145 = sphi 0, %s144
    %s159 = sphi 0, %s145
    %s165 = sphi 0, %s167
    %s168 = sphi 0, %s165
    %s169 = sphi 0, %s168
    %s185 = sphi 0, %s169
  $region4: #{pathnn_model_forward.3} parent=0 // loop_header_branch
    %15 = sbr.rel (%p13) target = $region8
  $region5: #{pathnn_model_forward.3} parent=0 // loop_body
    %s17 = ssub.s32 %s12, 1
    %s18 = ssub.s32 %s12, 2
    %s25 = sadd.s32 1, %s20
    %p26 = scmp.ge.s32.totalorder %s25, 1
    %s27 = scalar_select %p26, 0, %s25
    %s28 = sadd.s32 1, %s19
    %s29 = scalar_select %p26, %s28, %s19
    %p30 = scmp.ge.s32.totalorder %s29, 2
    %s31 = scalar_select %p30, 0, %s29
    %s33 = sadd.s32 %s32, 1
    %p36 = scmp.eq.s32.totalorder %s12, 1
    %p37 = scmp.ne.s32.totalorder %s32, %s34
    %p38 = scmp.eq.s32.totalorder %s12, 0
    %p39 = por %p37, %p38
    %p40 = scmp.ne.s32.totalorder %s32, %s34
    %p41 = scmp.eq.s32.totalorder %s17, 1
    %p42 = por %p40, %p41
    %p43 = scmp.ne.s32.totalorder %s34, %s35
    %p44 = scmp.eq.s32.totalorder %s17, 0
    %p45 = por %p43, %p44
    %p46 = scmp.ne.s32.totalorder %s34, %s35
    %p47 = scmp.eq.s32.totalorder %s18, 1
    %p48 = por %p46, %p47
    %p50 = scmp.ne.s32.totalorder %s35, %s49
    %p51 = scmp.eq.s32.totalorder %s18, 0
    %p52 = por %p50, %p51
    %s54 = sadd.s32 %s53, 1
    %p57 = scmp.eq.s32.totalorder %s12, 1
    %p58 = scmp.ne.s32.totalorder %s53, %s55
    %p59 = scmp.eq.s32.totalorder %s12, 0
    %p60 = por %p58, %p59
    %p61 = scmp.ne.s32.totalorder %s53, %s55
    %p62 = scmp.eq.s32.totalorder %s17, 1
    %p63 = por %p61, %p62
    %p64 = scmp.ne.s32.totalorder %s55, %s56
    %p65 = scmp.eq.s32.totalorder %s17, 0
    %p66 = por %p64, %p65
    %p67 = scmp.ne.s32.totalorder %s55, %s56
    %p68 = scmp.eq.s32.totalorder %s18, 1
    %p69 = por %p67, %p68
    %p71 = scmp.ne.s32.totalorder %s56, %s70
    %p72 = scmp.eq.s32.totalorder %s18, 0
    %p73 = por %p71, %p72
    %s75 = sadd.s32 %s74, 1
    %p78 = scmp.eq.s32.totalorder %s12, 1
    %p79 = scmp.ne.s32.totalorder %s74, %s76
    %p80 = scmp.eq.s32.totalorder %s12, 0
    %p81 = por %p79, %p80
    %p82 = scmp.ne.s32.totalorder %s74, %s76
    %p83 = scmp.eq.s32.totalorder %s17, 1
    %p84 = por %p82, %p83
    %p85 = scmp.ne.s32.totalorder %s76, %s77
    %p86 = scmp.eq.s32.totalorder %s17, 0
    %p87 = por %p85, %p86
    %p88 = scmp.ne.s32.totalorder %s76, %s77
    %p89 = scmp.eq.s32.totalorder %s18, 1
    %p90 = por %p88, %p89
    %p92 = scmp.ne.s32.totalorder %s77, %s91
    %p93 = scmp.eq.s32.totalorder %s18, 0
    %p94 = por %p92, %p93
    %s95 = ssub.s32 %s20, %s27
    %p96 = scmp.eq.s32.totalorder %s95, 0
    %s98 = sadd.s32 %s97, 1
    %s99 = scalar_select %p96, %s97, %s98
    %p102 = pneg %p96
    %p103 = scmp.eq.s32.totalorder %s12, 1
    %p104 = por %p102, %p103
    %p105 = scmp.ne.s32.totalorder %s97, %s100
    %p106 = scmp.eq.s32.totalorder %s12, 0
    %p107 = por %p105, %p106
    %p108 = scmp.ne.s32.totalorder %s97, %s100
    %p109 = scmp.eq.s32.totalorder %s17, 1
    %p110 = por %p108, %p109
    %p111 = scmp.ne.s32.totalorder %s100, %s101
    %p112 = scmp.eq.s32.totalorder %s17, 0
    %p113 = por %p111, %p112
    %p114 = scmp.ne.s32.totalorder %s100, %s101
    %p115 = scmp.eq.s32.totalorder %s18, 1
    %p116 = por %p114, %p115
    %p118 = scmp.ne.s32.totalorder %s101, %s117
    %p119 = scmp.eq.s32.totalorder %s18, 0
    %p120 = por %p118, %p119
    %s122 = sadd.s32 %s121, 1
    %p125 = scmp.eq.s32.totalorder %s12, 1
    %p126 = scmp.ne.s32.totalorder %s121, %s123
    %p127 = scmp.eq.s32.totalorder %s12, 0
    %p128 = por %p126, %p127
    %p129 = scmp.ne.s32.totalorder %s121, %s123
    %p130 = scmp.eq.s32.totalorder %s17, 1
    %p131 = por %p129, %p130
    %p132 = scmp.ne.s32.totalorder %s123, %s124
    %p133 = scmp.eq.s32.totalorder %s17, 0
    %p134 = por %p132, %p133
    %p135 = scmp.ne.s32.totalorder %s123, %s124
    %p136 = scmp.eq.s32.totalorder %s18, 1
    %p137 = por %p135, %p136
    %p139 = scmp.ne.s32.totalorder %s124, %s138
    %p140 = scmp.eq.s32.totalorder %s18, 0
    %p141 = por %p139, %p140
    %s143 = sadd.s32 %s142, 1
    %p146 = scmp.eq.s32.totalorder %s12, 1
    %p147 = scmp.ne.s32.totalorder %s142, %s144
    %p148 = scmp.eq.s32.totalorder %s12, 0
    %p149 = por %p147, %p148
    %p150 = scmp.ne.s32.totalorder %s142, %s144
    %p151 = scmp.eq.s32.totalorder %s17, 1
    %p152 = por %p150, %p151
    %p153 = scmp.ne.s32.totalorder %s144, %s145
    %p154 = scmp.eq.s32.totalorder %s17, 0
    %p155 = por %p153, %p154
    %p156 = scmp.ne.s32.totalorder %s144, %s145
    %p157 = scmp.eq.s32.totalorder %s18, 1
    %p158 = por %p156, %p157
    %p160 = scmp.ne.s32.totalorder %s145, %s159
    %p161 = scmp.eq.s32.totalorder %s18, 0
    %p162 = por %p160, %p161
    %s163 = ssub.s32 %s20, %s27
    %p164 = scmp.eq.s32.totalorder %s163, 0
    %s166 = sadd.s32 %s165, 1
    %s167 = scalar_select %p164, %s165, %s166
    %p170 = pneg %p164
    %p171 = scmp.eq.s32.totalorder %s12, 1
    %p172 = por %p170, %p171
    %p173 = scmp.ne.s32.totalorder %s165, %s168
    %p174 = scmp.eq.s32.totalorder %s12, 0
    %p175 = por %p173, %p174
    %p176 = scmp.ne.s32.totalorder %s165, %s168
    %p177 = scmp.eq.s32.totalorder %s17, 1
    %p178 = por %p176, %p177
    %p179 = scmp.ne.s32.totalorder %s168, %s169
    %p180 = scmp.eq.s32.totalorder %s17, 0
    %p181 = por %p179, %p180
    %p182 = scmp.ne.s32.totalorder %s168, %s169
    %p183 = scmp.eq.s32.totalorder %s18, 1
    %p184 = por %p182, %p183
    %p186 = scmp.ne.s32.totalorder %s169, %s185
    %p187 = scmp.eq.s32.totalorder %s18, 0
    %p188 = por %p186, %p187
    %p189 = scmp.le.s32.totalorder 1, %s12
    %p190 = scmp.lt.s32.totalorder %s12, 3
    %p191 = pnand %p189, %p190
    %p192 = pneg %p191
    // Predicated region
    $region9: #{pathnn_model_forward.3} parent=5 // pred_check
      _
    $region10: #{pathnn_model_forward.3} parent=5 // pred_check_branch
      %194 = sbr.rel (%p191) target = $region12
    $region11: #{pathnn_model_forward.3} parent=5 // pred_region
      %s195 = ssub.s32 %s12, 1
      // Predicated region
      $region13: #{pathnn_model_forward.3} parent=11 // pred_check
        %p196 = pneg %p45
      $region14: #{pathnn_model_forward.3} parent=11 // pred_check_branch
        %198 = sbr.rel (%p196) target = $region16
      $region15: #{pathnn_model_forward.3} parent=11 // pred_region
        _
      $region16: #{pathnn_model_forward.3} parent=11 // pred_fallthru
        _
      // Predicated region
      $region17: #{pathnn_model_forward.3} parent=11 // pred_check
        %p199 = pneg %p66
      $region18: #{pathnn_model_forward.3} parent=11 // pred_check_branch
        %201 = sbr.rel (%p199) target = $region20
      $region19: #{pathnn_model_forward.3} parent=11 // pred_region
        _
      $region20: #{pathnn_model_forward.3} parent=11 // pred_fallthru
        _
      // Predicated region
      $region21: #{pathnn_model_forward.3} parent=11 // pred_check
        %p202 = pneg %p87
      $region22: #{pathnn_model_forward.3} parent=11 // pred_check_branch
        %204 = sbr.rel (%p202) target = $region24
      $region23: #{pathnn_model_forward.3} parent=11 // pred_region
        _
      $region24: #{pathnn_model_forward.3} parent=11 // pred_fallthru
        _
      // Predicated region
      $region25: #{pathnn_model_forward.3} parent=11 // pred_check
        %p205 = pneg %p113
      $region26: #{pathnn_model_forward.3} parent=11 // pred_check_branch
        %207 = sbr.rel (%p205) target = $region28
      $region27: #{pathnn_model_forward.3} parent=11 // pred_region
        %s208 = smul.u32 16, %s22
        %p209 = scmp.lt.s32.totalorder %s208, 15
        %s210 = scalar_select %p209, %s208, 15
        %s211 = smul.addr %s210, 4
        %s212 = scalar_lea.vmem %s3, %s211
        %s213 = smul.u32 16, %s22
      $region28: #{pathnn_model_forward.3} parent=11 // pred_fallthru
        _
      // Predicated region
      $region29: #{pathnn_model_forward.3} parent=11 // pred_check
        %p214 = pneg %p134
      $region30: #{pathnn_model_forward.3} parent=11 // pred_check_branch
        %216 = sbr.rel (%p214) target = $region32
      $region31: #{pathnn_model_forward.3} parent=11 // pred_region
        _
      $region32: #{pathnn_model_forward.3} parent=11 // pred_fallthru
        _
      // Predicated region
      $region33: #{pathnn_model_forward.3} parent=11 // pred_check
        %p217 = pneg %p155
      $region34: #{pathnn_model_forward.3} parent=11 // pred_check_branch
        %219 = sbr.rel (%p217) target = $region36
      $region35: #{pathnn_model_forward.3} parent=11 // pred_region
        _
      $region36: #{pathnn_model_forward.3} parent=11 // pred_fallthru
        _
    $region12: #{pathnn_model_forward.3} parent=5 // pred_fallthru
      _
    %p220 = scmp.lt.s32.totalorder %s12, 2
    // Predicated region
    $region37: #{pathnn_model_forward.3} parent=5 // pred_check
      %p221 = pneg %p220
    $region38: #{pathnn_model_forward.3} parent=5 // pred_check_branch
      %223 = sbr.rel (%p221) target = $region40
    $region39: #{pathnn_model_forward.3} parent=5 // pred_region
      _
    $region40: #{pathnn_model_forward.3} parent=5 // pred_fallthru
      _
    %p224 = scmp.le.s32.totalorder 1, %s12
    %p225 = scmp.lt.s32.totalorder %s12, 3
    %p226 = pnand %p224, %p225
    %p227 = pneg %p226
    // Predicated region
    $region41: #{pathnn_model_forward.3} parent=5 // pred_check
      _
    $region42: #{pathnn_model_forward.3} parent=5 // pred_check_branch
      %229 = sbr.rel (%p226) target = $region44
    $region43: #{pathnn_model_forward.3} parent=5 // pred_region
      %s230 = ssub.s32 %s12, 1
      %p231 = pneg %p45
      %p232 = pneg %p42
      %p233 = pneg %p66
      %p234 = pneg %p63
      %p235 = pneg %p87
      %p236 = pneg %p84
      %s237 = smul.u32 16, %s22
      %p238 = scmp.lt.s32.totalorder %s237, 15
      %s239 = scalar_select %p238, %s237, 15
      %s240 = smul.addr %s239, 4
      %s241 = scalar_lea.vmem %s3, %s240
      %p242 = pneg %p113
      %p243 = pneg %p110
      %p244 = pneg %p134
      %p245 = pneg %p131
      %p246 = pneg %p155
      %p247 = pneg %p152
      %p248 = pneg %p181
      %p249 = pneg %p178
      %s250 = smul.u32 16, %s22
      %p251 = scmp.lt.s32.totalorder %s250, 15
      %s252 = scalar_select %p251, %s250, 15
      %s253 = smul.addr %s252, 8
      %s254 = scalar_lea.vmem %s6, %s253
      %s255 = smul.u32 16, %s22
      %p256 = scmp.lt.s32.totalorder %s255, 15
      %s257 = scalar_select %p256, %s255, 15
      %s258 = smul.addr %s257, 4
      %s259 = scalar_lea.vmem %s3, %s258
      %s260 = smul.u32 16, %s22
      %s261 = smul.u32 16, %s22
      %p262 = scmp.lt.s32.totalorder %s261, 15
      %s263 = scalar_select %p262, %s261, 15
      %s264 = smul.addr %s263, 8
      %s265 = scalar_lea.vmem %s6, %s264
      %s266 = smul.u32 16, %s22
      %p267 = scmp.lt.s32.totalorder %s21, 0
      %s268 = ssub.s32 0, %s21
      %s269 = scalar_select %p267, %s268, %s21
      %s270 = sand.u32 %s269, 1
      %s271 = ssub.s32 0, %s270
      %s272 = scalar_select %p267, %s271, %s270
      %p273 = scmp.ne.s32.totalorder %s272, 0
      %p274 = scmp.lt.s32.totalorder %s272, 0
      %p275 = pnand %p274, %p273
      %p276 = pneg %p275
      %s277 = sadd.s32 %s272, 2
      %s278 = scalar_select %p276, %s277, %s272
      %p279 = scmp.eq.s32.totalorder %s278, 0
      %p280 = scmp.eq.s32.totalorder %s21, 0
      %p281 = scmp.eq.s32.totalorder %s22, 0
      %p282 = pnand %p280, %p281
      %p283 = pneg %p282
      // Predicated region
      $region45: #{pathnn_model_forward.3} parent=43 // pred_check
        _
      $region46: #{pathnn_model_forward.3} parent=43 // pred_check_branch
        %285 = sbr.rel (%p282) target = $region48
      $region47: #{pathnn_model_forward.3} parent=43 // pred_region
        %v286 = vld [vmem:[%s0] sm:$0xff]
        %v287 = vld [vmem:[%s0 + $0x8] sm:$0xff]
        %v288 = vld [vmem:[%s0 + $0x10] sm:$0xff]
        %v289 = vld [vmem:[%s0 + $0x18] sm:$0xff]
        %v290 = vld [vmem:[%s0 + $0x20] sm:$0xff]
        %v291 = vld [vmem:[%s0 + $0x28] sm:$0xff]
        %v292 = vld [vmem:[%s0 + $0x30] sm:$0xff]
        %v293 = vld [vmem:[%s0 + $0x38] sm:$0xff]
        %v294 = vld [vmem:[%s0 + $0x40] sm:$0xff]
        %v295 = vld [vmem:[%s0 + $0x48] sm:$0xff]
        %v296 = vld [vmem:[%s0 + $0x50] sm:$0xff]
        %v297 = vld [vmem:[%s0 + $0x58] sm:$0xff]
        %v298 = vld [vmem:[%s0 + $0x60] sm:$0xff]
        %v299 = vld [vmem:[%s0 + $0x68] sm:$0xff]
        %v300 = vld [vmem:[%s0 + $0x70] sm:$0xff]
        %v301 = vld [vmem:[%s0 + $0x78] sm:$0xff]
        %v302 = vpack.c.bf16 %v287, %v286
        %v303 = vpack.c.bf16 %v289, %v288
        %v304 = vpack.c.bf16 %v291, %v290
        %v305 = vpack.c.bf16 %v293, %v292
        %v306 = vpack.c.bf16 %v295, %v294
        %v307 = vpack.c.bf16 %v297, %v296
        %v308 = vpack.c.bf16 %v299, %v298
        %v309 = vpack.c.bf16 %v301, %v300
        %v310 = vld [vmem:[%s1] sm:$0xf]
        %v311 = vld [vmem:[%s1 + $0x4] sm:$0xf]
        %v312 = vld [vmem:[%s1 + $0x8] sm:$0xf]
        %v313 = vld [vmem:[%s1 + $0xc] sm:$0xf]
        %v314 = vld [vmem:[%s1 + $0x10] sm:$0xf]
        %v315 = vld [vmem:[%s1 + $0x14] sm:$0xf]
        %v316 = vld [vmem:[%s1 + $0x18] sm:$0xf]
        %v317 = vld [vmem:[%s1 + $0x1c] sm:$0xf]
        %v318 = vld [vmem:[%s1 + $0x20] sm:$0xf]
        %v319 = vld [vmem:[%s1 + $0x24] sm:$0xf]
        %v320 = vld [vmem:[%s1 + $0x28] sm:$0xf]
        %v321 = vld [vmem:[%s1 + $0x2c] sm:$0xf]
        %v322 = vld [vmem:[%s1 + $0x30] sm:$0xf]
        %v323 = vld [vmem:[%s1 + $0x34] sm:$0xf]
        %v324 = vld [vmem:[%s1 + $0x38] sm:$0xf]
        %v325 = vld [vmem:[%s1 + $0x3c] sm:$0xf]
        %v326 = vld [vmem:[%s2] sm:$0x1]
        %v328 = vperm.slane %v326, 0
        %v346 = vunpack.c.l.b16 %v310
        %v347 = vunpack.c.l.b16 %v311
        %v348 = vunpack.c.l.b16 %v312
        %v349 = vunpack.c.l.b16 %v313
        %v350 = vunpack.c.l.b16 %v314
        %v351 = vunpack.c.l.b16 %v315
        %v352 = vunpack.c.l.b16 %v316
        %v353 = vunpack.c.l.b16 %v317
        %v354 = vunpack.c.l.b16 %v318
        %v355 = vunpack.c.l.b16 %v319
        %v356 = vunpack.c.l.b16 %v320
        %v357 = vunpack.c.l.b16 %v321
        %v358 = vunpack.c.l.b16 %v322
        %v359 = vunpack.c.l.b16 %v323
        %v360 = vunpack.c.l.b16 %v324
        %v361 = vunpack.c.l.b16 %v325
        %v362 = vpack.c.b16 %v347, %v346
        %v363 = vpack.c.b16 %v349, %v348
        %v364 = vpack.c.b16 %v351, %v350
        %v365 = vpack.c.b16 %v353, %v352
        %v366 = vpack.c.b16 %v355, %v354
        %v367 = vpack.c.b16 %v357, %v356
        %v368 = vpack.c.b16 %v359, %v358
        %v369 = vpack.c.b16 %v361, %v360
        %378 = vmatpush.bf16.msra.mxu0 %v369
        %379 = vmatpush.bf16.msra.mxu0 %v368
        %380 = vmatpush.bf16.msra.mxu0 %v367
        %381 = vmatpush.bf16.msra.mxu0 %v366
        %382 = vmatpush.bf16.msra.mxu0 %v365
        %383 = vmatpush.bf16.msra.mxu0 %v364
        %384 = vmatpush.bf16.msra.mxu0 %v363
        %385 = vmatpush.bf16.msra.mxu0 %v362
        %386 = vmatmul.bf16.gmra.mxu0 %v302
        %v387 = vpop.f32.mrf.mxu0
        %v388 = vadd.f32 %v328, %v387
        %v389 = vpop.f32.mrf.mxu0
        %v390 = vadd.f32 %v328, %v389
        %391 = vmatmul.bf16.gmra.mxu0 %v303
        %v392 = vpop.f32.mrf.mxu0
        %v393 = vadd.f32 %v328, %v392
        %v394 = vpop.f32.mrf.mxu0
        %v395 = vadd.f32 %v328, %v394
        %396 = vmatmul.bf16.gmra.mxu0 %v304
        %v397 = vpop.f32.mrf.mxu0
        %v398 = vadd.f32 %v328, %v397
        %v399 = vpop.f32.mrf.mxu0
        %v400 = vadd.f32 %v328, %v399
        %401 = vmatmul.bf16.gmra.mxu0 %v305
        %v402 = vpop.f32.mrf.mxu0
        %v403 = vadd.f32 %v328, %v402
        %v404 = vpop.f32.mrf.mxu0
        %v405 = vadd.f32 %v328, %v404
        %406 = vmatmul.bf16.gmra.mxu0 %v306
        %v407 = vpop.f32.mrf.mxu0
        %v408 = vadd.f32 %v328, %v407
        %v409 = vpop.f32.mrf.mxu0
        %v410 = vadd.f32 %v328, %v409
        %411 = vmatmul.bf16.gmra.mxu0 %v307
        %v412 = vpop.f32.mrf.mxu0
        %v413 = vadd.f32 %v328, %v412
        %v414 = vpop.f32.mrf.mxu0
        %v415 = vadd.f32 %v328, %v414
        %416 = vmatmul.bf16.gmra.mxu0 %v308
        %v417 = vpop.f32.mrf.mxu0
        %v418 = vadd.f32 %v328, %v417
        %v419 = vpop.f32.mrf.mxu0
        %v420 = vadd.f32 %v328, %v419
        %421 = vmatmul.bf16.gmra.mxu0 %v309
        %v422 = vpop.f32.mrf.mxu0
        %v423 = vadd.f32 %v328, %v422
        %v424 = vpop.f32.mrf.mxu0
        %v425 = vadd.f32 %v328, %v424
        %426 = vdwg.mxu0
        %427 = vst [vmem:[#allocation2] sm:$0xff] %v388
        %428 = vst [vmem:[#allocation2 + $0x8] sm:$0xff] %v390
        %429 = vst [vmem:[#allocation2 + $0x10] sm:$0xff] %v393
        %430 = vst [vmem:[#allocation2 + $0x18] sm:$0xff] %v395
        %431 = vst [vmem:[#allocation2 + $0x20] sm:$0xff] %v398
        %432 = vst [vmem:[#allocation2 + $0x28] sm:$0xff] %v400
        %433 = vst [vmem:[#allocation2 + $0x30] sm:$0xff] %v403
        %434 = vst [vmem:[#allocation2 + $0x38] sm:$0xff] %v405
        %435 = vst [vmem:[#allocation2 + $0x40] sm:$0xff] %v408
        %436 = vst [vmem:[#allocation2 + $0x48] sm:$0xff] %v410
        %437 = vst [vmem:[#allocation2 + $0x50] sm:$0xff] %v413
        %438 = vst [vmem:[#allocation2 + $0x58] sm:$0xff] %v415
        %439 = vst [vmem:[#allocation2 + $0x60] sm:$0xff] %v418
        %440 = vst [vmem:[#allocation2 + $0x68] sm:$0xff] %v420
        %441 = vst [vmem:[#allocation2 + $0x70] sm:$0xff] %v423
        %442 = vst [vmem:[#allocation2 + $0x78] sm:$0xff] %v425
      $region48: #{pathnn_model_forward.3} parent=43 // pred_fallthru
        _
      // Predicated region
      $region49: #{pathnn_model_forward.3} parent=43 // pred_check
        %p443 = pneg %p281
      $region50: #{pathnn_model_forward.3} parent=43 // pred_check_branch
        %445 = sbr.rel (%p443) target = $region52
      $region51: #{pathnn_model_forward.3} parent=43 // pred_region
        %v446 = vld [vmem:[#allocation2] sm:$0xff]
        %v447 = vld [vmem:[#allocation2 + $0x8] sm:$0xff]
        %v448 = vld [vmem:[#allocation2 + $0x10] sm:$0xff]
        %v449 = vld [vmem:[#allocation2 + $0x18] sm:$0xff]
        %v450 = vld [vmem:[#allocation2 + $0x20] sm:$0xff]
        %v451 = vld [vmem:[#allocation2 + $0x28] sm:$0xff]
        %v452 = vld [vmem:[#allocation2 + $0x30] sm:$0xff]
        %v453 = vld [vmem:[#allocation2 + $0x38] sm:$0xff]
        %v454 = vld [vmem:[#allocation2 + $0x40] sm:$0xff]
        %v455 = vld [vmem:[#allocation2 + $0x48] sm:$0xff]
        %v456 = vld [vmem:[#allocation2 + $0x50] sm:$0xff]
        %v457 = vld [vmem:[#allocation2 + $0x58] sm:$0xff]
        %v458 = vld [vmem:[#allocation2 + $0x60] sm:$0xff]
        %v459 = vld [vmem:[#allocation2 + $0x68] sm:$0xff]
        %v460 = vld [vmem:[#allocation2 + $0x70] sm:$0xff]
        %v461 = vld [vmem:[#allocation2 + $0x78] sm:$0xff]
        %v462 = vld [vmem:[#allocation3] sm:$0xff]
        %v463 = vld [vmem:[#allocation3 + $0x8] sm:$0xff]
        %v464 = vld [vmem:[#allocation3 + $0x10] sm:$0xff]
        %v465 = vld [vmem:[#allocation3 + $0x18] sm:$0xff]
        %v466 = vld [vmem:[#allocation3 + $0x20] sm:$0xff]
        %v467 = vld [vmem:[#allocation3 + $0x28] sm:$0xff]
        %v468 = vld [vmem:[#allocation3 + $0x30] sm:$0xff]
        %v469 = vld [vmem:[#allocation3 + $0x38] sm:$0xff]
        %v470 = vld [vmem:[#allocation3 + $0x40] sm:$0xff]
        %v471 = vld [vmem:[#allocation3 + $0x48] sm:$0xff]
        %v472 = vld [vmem:[#allocation3 + $0x50] sm:$0xff]
        %v473 = vld [vmem:[#allocation3 + $0x58] sm:$0xff]
        %v474 = vld [vmem:[#allocation3 + $0x60] sm:$0xff]
        %v475 = vld [vmem:[#allocation3 + $0x68] sm:$0xff]
        %v476 = vld [vmem:[#allocation3 + $0x70] sm:$0xff]
        %v477 = vld [vmem:[#allocation3 + $0x78] sm:$0xff]
        %s478 = scalar_select %p279, 1, 0
        %v479 = vstv %s478
        %vm480 = vcmp.eq.s32.totalorder %v479, 1
        %v481 = vsel %vm480, %v446, %v462
        %v482 = vsel %vm480, %v447, %v463
        %v483 = vsel %vm480, %v448, %v464
        %v484 = vsel %vm480, %v449, %v465
        %v485 = vsel %vm480, %v450, %v466
        %v486 = vsel %vm480, %v451, %v467
        %v487 = vsel %vm480, %v452, %v468
        %v488 = vsel %vm480, %v453, %v469
        %v489 = vsel %vm480, %v454, %v470
        %v490 = vsel %vm480, %v455, %v471
        %v491 = vsel %vm480, %v456, %v472
        %v492 = vsel %vm480, %v457, %v473
        %v493 = vsel %vm480, %v458, %v474
        %v494 = vsel %vm480, %v459, %v475
        %v495 = vsel %vm480, %v460, %v476
        %v496 = vsel %vm480, %v461, %v477
        %v497 = vpack.c.bf16 %v482, %v481
        %v498 = vpack.c.bf16 %v484, %v483
        %v499 = vpack.c.bf16 %v486, %v485
        %v500 = vpack.c.bf16 %v488, %v487
        %v501 = vpack.c.bf16 %v490, %v489
        %v502 = vpack.c.bf16 %v492, %v491
        %v503 = vpack.c.bf16 %v494, %v493
        %v504 = vpack.c.bf16 %v496, %v495
        %s505 = smul.u32 %s21, 16
        %s506 = smul.addr %s505, 4
        %s507 = scalar_lea.vmem %s4, %s506
        %v508 = vld [vmem:[%s507] sm:$0xf]
        %v509 = vld [vmem:[%s507 + $0x4] sm:$0xf]
        %v510 = vld [vmem:[%s507 + $0x8] sm:$0xf]
        %v511 = vld [vmem:[%s507 + $0xc] sm:$0xf]
        %v512 = vld [vmem:[%s507 + $0x10] sm:$0xf]
        %v513 = vld [vmem:[%s507 + $0x14] sm:$0xf]
        %v514 = vld [vmem:[%s507 + $0x18] sm:$0xf]
        %v515 = vld [vmem:[%s507 + $0x1c] sm:$0xf]
        %v516 = vld [vmem:[%s507 + $0x20] sm:$0xf]
        %v517 = vld [vmem:[%s507 + $0x24] sm:$0xf]
        %v518 = vld [vmem:[%s507 + $0x28] sm:$0xf]
        %v519 = vld [vmem:[%s507 + $0x2c] sm:$0xf]
        %v520 = vld [vmem:[%s507 + $0x30] sm:$0xf]
        %v521 = vld [vmem:[%s507 + $0x34] sm:$0xf]
        %v522 = vld [vmem:[%s507 + $0x38] sm:$0xf]
        %v523 = vld [vmem:[%s507 + $0x3c] sm:$0xf]
        %v540 = vunpack.c.l.b16 %v508
        %v541 = vunpack.c.l.b16 %v509
        %v542 = vunpack.c.l.b16 %v510
        %v543 = vunpack.c.l.b16 %v511
        %v544 = vunpack.c.l.b16 %v512
        %v545 = vunpack.c.l.b16 %v513
        %v546 = vunpack.c.l.b16 %v514
        %v547 = vunpack.c.l.b16 %v515
        %v548 = vunpack.c.l.b16 %v516
        %v549 = vunpack.c.l.b16 %v517
        %v550 = vunpack.c.l.b16 %v518
        %v551 = vunpack.c.l.b16 %v519
        %v552 = vunpack.c.l.b16 %v520
        %v553 = vunpack.c.l.b16 %v521
        %v554 = vunpack.c.l.b16 %v522
        %v555 = vunpack.c.l.b16 %v523
        %v556 = vpack.c.b16 %v541, %v540
        %v557 = vpack.c.b16 %v543, %v542
        %v558 = vpack.c.b16 %v545, %v544
        %v559 = vpack.c.b16 %v547, %v546
        %v560 = vpack.c.b16 %v549, %v548
        %v561 = vpack.c.b16 %v551, %v550
        %v562 = vpack.c.b16 %v553, %v552
        %v563 = vpack.c.b16 %v555, %v554
        %572 = vmatpush.bf16.msra.mxu0 %v563
        %573 = vmatpush.bf16.msra.mxu0 %v562
        %574 = vmatpush.bf16.msra.mxu0 %v561
        %575 = vmatpush.bf16.msra.mxu0 %v560
        %576 = vmatpush.bf16.msra.mxu0 %v559
        %577 = vmatpush.bf16.msra.mxu0 %v558
        %578 = vmatpush.bf16.msra.mxu0 %v557
        %579 = vmatpush.bf16.msra.mxu0 %v556
        %580 = vmatmul.bf16.gmra.mxu0 %v497
        %v581 = vpop.f32.mrf.mxu0
        %v582 = vadd.f32 0.0, %v581
        %v583 = vpop.f32.mrf.mxu0
        %v584 = vadd.f32 0.0, %v583
        %585 = vmatmul.bf16.gmra.mxu0 %v498
        %v586 = vpop.f32.mrf.mxu0
        %v587 = vadd.f32 0.0, %v586
        %v588 = vpop.f32.mrf.mxu0
        %v589 = vadd.f32 0.0, %v588
        %590 = vmatmul.bf16.gmra.mxu0 %v499
        %v591 = vpop.f32.mrf.mxu0
        %v592 = vadd.f32 0.0, %v591
        %v593 = vpop.f32.mrf.mxu0
        %v594 = vadd.f32 0.0, %v593
        %595 = vmatmul.bf16.gmra.mxu0 %v500
        %v596 = vpop.f32.mrf.mxu0
        %v597 = vadd.f32 0.0, %v596
        %v598 = vpop.f32.mrf.mxu0
        %v599 = vadd.f32 0.0, %v598
        %600 = vmatmul.bf16.gmra.mxu0 %v501
        %v601 = vpop.f32.mrf.mxu0
        %v602 = vadd.f32 0.0, %v601
        %v603 = vpop.f32.mrf.mxu0
        %v604 = vadd.f32 0.0, %v603
        %605 = vmatmul.bf16.gmra.mxu0 %v502
        %v606 = vpop.f32.mrf.mxu0
        %v607 = vadd.f32 0.0, %v606
        %v608 = vpop.f32.mrf.mxu0
        %v609 = vadd.f32 0.0, %v608
        %610 = vmatmul.bf16.gmra.mxu0 %v503
        %v611 = vpop.f32.mrf.mxu0
        %v612 = vadd.f32 0.0, %v611
        %v613 = vpop.f32.mrf.mxu0
        %v614 = vadd.f32 0.0, %v613
        %615 = vmatmul.bf16.gmra.mxu0 %v504
        %v616 = vpop.f32.mrf.mxu0
        %v617 = vadd.f32 0.0, %v616
        %v618 = vpop.f32.mrf.mxu0
        %v619 = vadd.f32 0.0, %v618
        %620 = vdwg.mxu0
        %v621 = vpack.c.bf16 %v582, %v582
        %v622 = vpack.c.bf16 %v584, %v584
        %v623 = vpack.c.bf16 %v587, %v587
        %v624 = vpack.c.bf16 %v589, %v589
        %v625 = vpack.c.bf16 %v592, %v592
        %v626 = vpack.c.bf16 %v594, %v594
        %v627 = vpack.c.bf16 %v597, %v597
        %v628 = vpack.c.bf16 %v599, %v599
        %v629 = vpack.c.bf16 %v602, %v602
        %v630 = vpack.c.bf16 %v604, %v604
        %v631 = vpack.c.bf16 %v607, %v607
        %v632 = vpack.c.bf16 %v609, %v609
        %v633 = vpack.c.bf16 %v612, %v612
        %v634 = vpack.c.bf16 %v614, %v614
        %v635 = vpack.c.bf16 %v617, %v617
        %v636 = vpack.c.bf16 %v619, %v619
        %637 = vst [vmem:[#allocation4] sm:$0xf] %v621
        %638 = vst [vmem:[#allocation4 + $0x4] sm:$0xf] %v622
        %639 = vst [vmem:[#allocation4 + $0x8] sm:$0xf] %v623
        %640 = vst [vmem:[#allocation4 + $0xc] sm:$0xf] %v624
        %641 = vst [vmem:[#allocation4 + $0x10] sm:$0xf] %v625
        %642 = vst [vmem:[#allocation4 + $0x14] sm:$0xf] %v626
        %643 = vst [vmem:[#allocation4 + $0x18] sm:$0xf] %v627
        %644 = vst [vmem:[#allocation4 + $0x1c] sm:$0xf] %v628
        %645 = vst [vmem:[#allocation4 + $0x20] sm:$0xf] %v629
        %646 = vst [vmem:[#allocation4 + $0x24] sm:$0xf] %v630
        %647 = vst [vmem:[#allocation4 + $0x28] sm:$0xf] %v631
        %648 = vst [vmem:[#allocation4 + $0x2c] sm:$0xf] %v632
        %649 = vst [vmem:[#allocation4 + $0x30] sm:$0xf] %v633
        %650 = vst [vmem:[#allocation4 + $0x34] sm:$0xf] %v634
        %651 = vst [vmem:[#allocation4 + $0x38] sm:$0xf] %v635
        %652 = vst [vmem:[#allocation4 + $0x3c] sm:$0xf] %v636
      $region52: #{pathnn_model_forward.3} parent=43 // pred_fallthru
        _
      %v653 = vld [vmem:[%s259] sm:$0xf]
      %v654 = vld [vmem:[%s259 + $0x4] sm:$0xf]
      %v655 = vld [vmem:[%s259 + $0x8] sm:$0xf]
      %v656 = vld [vmem:[%s259 + $0xc] sm:$0xf]
      %v657 = vld [vmem:[%s259 + $0x10] sm:$0xf]
      %v658 = vld [vmem:[%s259 + $0x14] sm:$0xf]
      %v659 = vld [vmem:[%s259 + $0x18] sm:$0xf]
      %v660 = vld [vmem:[%s259 + $0x1c] sm:$0xf]
      %v661 = vld [vmem:[%s259 + $0x20] sm:$0xf]
      %v662 = vld [vmem:[%s259 + $0x24] sm:$0xf]
      %v663 = vld [vmem:[%s259 + $0x28] sm:$0xf]
      %v664 = vld [vmem:[%s259 + $0x2c] sm:$0xf]
      %v665 = vld [vmem:[%s259 + $0x30] sm:$0xf]
      %v666 = vld [vmem:[%s259 + $0x34] sm:$0xf]
      %v667 = vld [vmem:[%s259 + $0x38] sm:$0xf]
      %v668 = vld [vmem:[%s259 + $0x3c] sm:$0xf]
      %v669 = vld [vmem:[#allocation4] sm:$0xf]
      %v670 = vld [vmem:[#allocation4 + $0x4] sm:$0xf]
      %v671 = vld [vmem:[#allocation4 + $0x8] sm:$0xf]
      %v672 = vld [vmem:[#allocation4 + $0xc] sm:$0xf]
      %v673 = vld [vmem:[#allocation4 + $0x10] sm:$0xf]
      %v674 = vld [vmem:[#allocation4 + $0x14] sm:$0xf]
      %v675 = vld [vmem:[#allocation4 + $0x18] sm:$0xf]
      %v676 = vld [vmem:[#allocation4 + $0x1c] sm:$0xf]
      %v677 = vld [vmem:[#allocation4 + $0x20] sm:$0xf]
      %v678 = vld [vmem:[#allocation4 + $0x24] sm:$0xf]
      %v679 = vld [vmem:[#allocation4 + $0x28] sm:$0xf]
      %v680 = vld [vmem:[#allocation4 + $0x2c] sm:$0xf]
      %v681 = vld [vmem:[#allocation4 + $0x30] sm:$0xf]
      %v682 = vld [vmem:[#allocation4 + $0x34] sm:$0xf]
      %v683 = vld [vmem:[#allocation4 + $0x38] sm:$0xf]
      %v684 = vld [vmem:[#allocation4 + $0x3c] sm:$0xf]
      %s685 = scalar_lea.vmem %s5, %s21
      %v686 = vld [vmem:[%s685] sm:$0x1]
      %v688 = vperm.slane %v686, 0
      %v706 = vunpack.c.l.b16 %v653
      %v707 = vunpack.c.l.b16 %v654
      %v708 = vunpack.c.l.b16 %v655
      %v709 = vunpack.c.l.b16 %v656
      %v710 = vunpack.c.l.b16 %v657
      %v711 = vunpack.c.l.b16 %v658
      %v712 = vunpack.c.l.b16 %v659
      %v713 = vunpack.c.l.b16 %v660
      %v714 = vunpack.c.l.b16 %v661
      %v715 = vunpack.c.l.b16 %v662
      %v716 = vunpack.c.l.b16 %v663
      %v717 = vunpack.c.l.b16 %v664
      %v718 = vunpack.c.l.b16 %v665
      %v719 = vunpack.c.l.b16 %v666
      %v720 = vunpack.c.l.b16 %v667
      %v721 = vunpack.c.l.b16 %v668
      %v722 = vpack.c.b16 %v707, %v706
      %v723 = vpack.c.b16 %v709, %v708
      %v724 = vpack.c.b16 %v711, %v710
      %v725 = vpack.c.b16 %v713, %v712
      %v726 = vpack.c.b16 %v715, %v714
      %v727 = vpack.c.b16 %v717, %v716
      %v728 = vpack.c.b16 %v719, %v718
      %v729 = vpack.c.b16 %v721, %v720
      %v754 = vunpack.c.l.b16 %v669
      %v755 = vunpack.c.l.b16 %v670
      %v756 = vunpack.c.l.b16 %v671
      %v757 = vunpack.c.l.b16 %v672
      %v758 = vunpack.c.l.b16 %v673
      %v759 = vunpack.c.l.b16 %v674
      %v760 = vunpack.c.l.b16 %v675
      %v761 = vunpack.c.l.b16 %v676
      %v762 = vunpack.c.l.b16 %v677
      %v763 = vunpack.c.l.b16 %v678
      %v764 = vunpack.c.l.b16 %v679
      %v765 = vunpack.c.l.b16 %v680
      %v766 = vunpack.c.l.b16 %v681
      %v767 = vunpack.c.l.b16 %v682
      %v768 = vunpack.c.l.b16 %v683
      %v769 = vunpack.c.l.b16 %v684
      %v770 = vpack.c.b16 %v755, %v754
      %v771 = vpack.c.b16 %v757, %v756
      %v772 = vpack.c.b16 %v759, %v758
      %v773 = vpack.c.b16 %v761, %v760
      %v774 = vpack.c.b16 %v763, %v762
      %v775 = vpack.c.b16 %v765, %v764
      %v776 = vpack.c.b16 %v767, %v766
      %v777 = vpack.c.b16 %v769, %v768
      %786 = vmatpush.bf16.msra.mxu0 %v777
      %787 = vmatpush.bf16.msra.mxu0 %v776
      %788 = vmatpush.bf16.msra.mxu0 %v775
      %789 = vmatpush.bf16.msra.mxu0 %v774
      %790 = vmatpush.bf16.msra.mxu0 %v773
      %791 = vmatpush.bf16.msra.mxu0 %v772
      %792 = vmatpush.bf16.msra.mxu0 %v771
      %793 = vmatpush.bf16.msra.mxu0 %v770
      %794 = vmatmul.bf16.gmra.mxu0 %v722
      %v795 = vpop.f32.mrf.mxu0
      %v796 = vadd.f32 %v688, %v795
      %v797 = vpop.f32.mrf.mxu0
      %v798 = vadd.f32 %v688, %v797
      %799 = vmatmul.bf16.gmra.mxu0 %v723
      %v800 = vpop.f32.mrf.mxu0
      %v801 = vadd.f32 %v688, %v800
      %v802 = vpop.f32.mrf.mxu0
      %v803 = vadd.f32 %v688, %v802
      %804 = vmatmul.bf16.gmra.mxu0 %v724
      %v805 = vpop.f32.mrf.mxu0
      %v806 = vadd.f32 %v688, %v805
      %v807 = vpop.f32.mrf.mxu0
      %v808 = vadd.f32 %v688, %v807
      %809 = vmatmul.bf16.gmra.mxu0 %v725
      %v810 = vpop.f32.mrf.mxu0
      %v811 = vadd.f32 %v688, %v810
      %v812 = vpop.f32.mrf.mxu0
      %v813 = vadd.f32 %v688, %v812
      %814 = vmatmul.bf16.gmra.mxu0 %v726
      %v815 = vpop.f32.mrf.mxu0
      %v816 = vadd.f32 %v688, %v815
      %v817 = vpop.f32.mrf.mxu0
      %v818 = vadd.f32 %v688, %v817
      %819 = vmatmul.bf16.gmra.mxu0 %v727
      %v820 = vpop.f32.mrf.mxu0
      %v821 = vadd.f32 %v688, %v820
      %v822 = vpop.f32.mrf.mxu0
      %v823 = vadd.f32 %v688, %v822
      %824 = vmatmul.bf16.gmra.mxu0 %v728
      %v825 = vpop.f32.mrf.mxu0
      %v826 = vadd.f32 %v688, %v825
      %v827 = vpop.f32.mrf.mxu0
      %v828 = vadd.f32 %v688, %v827
      %829 = vmatmul.bf16.gmra.mxu0 %v729
      %v830 = vpop.f32.mrf.mxu0
      %v831 = vadd.f32 %v688, %v830
      %v832 = vpop.f32.mrf.mxu0
      %v833 = vadd.f32 %v688, %v832
      %834 = vdwg.mxu0
      %v835 = vmax.f32 %v796, 0.0
      %v836 = vmax.f32 %v798, 0.0
      %v837 = vmax.f32 %v801, 0.0
      %v838 = vmax.f32 %v803, 0.0
      %v839 = vmax.f32 %v806, 0.0
      %v840 = vmax.f32 %v808, 0.0
      %v841 = vmax.f32 %v811, 0.0
      %v842 = vmax.f32 %v813, 0.0
      %v843 = vmax.f32 %v816, 0.0
      %v844 = vmax.f32 %v818, 0.0
      %v845 = vmax.f32 %v821, 0.0
      %v846 = vmax.f32 %v823, 0.0
      %v847 = vmax.f32 %v826, 0.0
      %v848 = vmax.f32 %v828, 0.0
      %v849 = vmax.f32 %v831, 0.0
      %v850 = vmax.f32 %v833, 0.0
      %851 = vst [vmem:[%s265] sm:$0xff] %v835
      %852 = vst [vmem:[%s265 + $0x8] sm:$0xff] %v836
      %853 = vst [vmem:[%s265 + $0x10] sm:$0xff] %v837
      %854 = vst [vmem:[%s265 + $0x18] sm:$0xff] %v838
      %855 = vst [vmem:[%s265 + $0x20] sm:$0xff] %v839
      %856 = vst [vmem:[%s265 + $0x28] sm:$0xff] %v840
      %857 = vst [vmem:[%s265 + $0x30] sm:$0xff] %v841
      %858 = vst [vmem:[%s265 + $0x38] sm:$0xff] %v842
      %859 = vst [vmem:[%s265 + $0x40] sm:$0xff] %v843
      %860 = vst [vmem:[%s265 + $0x48] sm:$0xff] %v844
      %861 = vst [vmem:[%s265 + $0x50] sm:$0xff] %v845
      %862 = vst [vmem:[%s265 + $0x58] sm:$0xff] %v846
      %863 = vst [vmem:[%s265 + $0x60] sm:$0xff] %v847
      %864 = vst [vmem:[%s265 + $0x68] sm:$0xff] %v848
      %865 = vst [vmem:[%s265 + $0x70] sm:$0xff] %v849
      %866 = vst [vmem:[%s265 + $0x78] sm:$0xff] %v850
      %s867 = smul.u32 %s22, 128
      // Predicated region
      $region53: #{pathnn_model_forward.3} parent=43 // pred_check
        %p868 = pneg %p279
      $region54: #{pathnn_model_forward.3} parent=43 // pred_check_branch
        %870 = sbr.rel (%p868) target = $region56
      $region55: #{pathnn_model_forward.3} parent=43 // pred_region
        %s871 = scalar_lea.vmem [#allocation3], %s867
        %872 = vst [vmem:[%s871] sm:$0xff] %v835
        %873 = vst [vmem:[%s871 + $0x8] sm:$0xff] %v836
        %874 = vst [vmem:[%s871 + $0x10] sm:$0xff] %v837
        %875 = vst [vmem:[%s871 + $0x18] sm:$0xff] %v838
        %876 = vst [vmem:[%s871 + $0x20] sm:$0xff] %v839
        %877 = vst [vmem:[%s871 + $0x28] sm:$0xff] %v840
        %878 = vst [vmem:[%s871 + $0x30] sm:$0xff] %v841
        %879 = vst [vmem:[%s871 + $0x38] sm:$0xff] %v842
        %880 = vst [vmem:[%s871 + $0x40] sm:$0xff] %v843
        %881 = vst [vmem:[%s871 + $0x48] sm:$0xff] %v844
        %882 = vst [vmem:[%s871 + $0x50] sm:$0xff] %v845
        %883 = vst [vmem:[%s871 + $0x58] sm:$0xff] %v846
        %884 = vst [vmem:[%s871 + $0x60] sm:$0xff] %v847
        %885 = vst [vmem:[%s871 + $0x68] sm:$0xff] %v848
        %886 = vst [vmem:[%s871 + $0x70] sm:$0xff] %v849
        %887 = vst [vmem:[%s871 + $0x78] sm:$0xff] %v850
      $region56: #{pathnn_model_forward.3} parent=43 // pred_fallthru
        _
      %p888 = scmp.ne.s32.totalorder %s278, 0
      // Predicated region
      $region57: #{pathnn_model_forward.3} parent=43 // pred_check
        %p889 = pneg %p888
      $region58: #{pathnn_model_forward.3} parent=43 // pred_check_branch
        %891 = sbr.rel (%p889) target = $region60
      $region59: #{pathnn_model_forward.3} parent=43 // pred_region
        %s892 = scalar_lea.vmem [#allocation2], %s867
        %893 = vst [vmem:[%s892] sm:$0xff] %v835
        %894 = vst [vmem:[%s892 + $0x8] sm:$0xff] %v836
        %895 = vst [vmem:[%s892 + $0x10] sm:$0xff] %v837
        %896 = vst [vmem:[%s892 + $0x18] sm:$0xff] %v838
        %897 = vst [vmem:[%s892 + $0x20] sm:$0xff] %v839
        %898 = vst [vmem:[%s892 + $0x28] sm:$0xff] %v840
        %899 = vst [vmem:[%s892 + $0x30] sm:$0xff] %v841
        %900 = vst [vmem:[%s892 + $0x38] sm:$0xff] %v842
        %901 = vst [vmem:[%s892 + $0x40] sm:$0xff] %v843
        %902 = vst [vmem:[%s892 + $0x48] sm:$0xff] %v844
        %903 = vst [vmem:[%s892 + $0x50] sm:$0xff] %v845
        %904 = vst [vmem:[%s892 + $0x58] sm:$0xff] %v846
        %905 = vst [vmem:[%s892 + $0x60] sm:$0xff] %v847
        %906 = vst [vmem:[%s892 + $0x68] sm:$0xff] %v848
        %907 = vst [vmem:[%s892 + $0x70] sm:$0xff] %v849
        %908 = vst [vmem:[%s892 + $0x78] sm:$0xff] %v850
      $region60: #{pathnn_model_forward.3} parent=43 // pred_fallthru
        _
      %s909 = smul.u32 16, %s22
      %p910 = scmp.lt.s32.totalorder %s909, 15
      %s911 = scalar_select %p910, %s909, 15
      %s912 = smul.addr %s911, 8
      %s913 = scalar_lea.vmem %s6, %s912
      // Predicated region
      $region61: #{pathnn_model_forward.3} parent=43 // pred_check
        %p914 = pneg %p178
      $region62: #{pathnn_model_forward.3} parent=43 // pred_check_branch
        %916 = sbr.rel (%p914) target = $region64
      $region63: #{pathnn_model_forward.3} parent=43 // pred_region
        %s917 = smul.u32 16, %s22
      $region64: #{pathnn_model_forward.3} parent=43 // pred_fallthru
        _
      // Predicated region
      $region65: #{pathnn_model_forward.3} parent=43 // pred_check
        %p918 = pneg %p178
      $region66: #{pathnn_model_forward.3} parent=43 // pred_check_branch
        %920 = sbr.rel (%p918) target = $region68
      $region67: #{pathnn_model_forward.3} parent=43 // pred_region
        %s921 = smul.u32 16, %s22
        %p922 = scmp.lt.s32.totalorder %s921, 15
        %s923 = scalar_select %p922, %s921, 15
        %s924 = smul.addr %s923, 8
        %s925 = scalar_lea.vmem %s6, %s924
      $region68: #{pathnn_model_forward.3} parent=43 // pred_fallthru
        _
    $region44: #{pathnn_model_forward.3} parent=5 // pred_fallthru
      _
    %p926 = scmp.le.s32.totalorder 2, %s12
    // Predicated region
    $region69: #{pathnn_model_forward.3} parent=5 // pred_check
      %p927 = pneg %p926
    $region70: #{pathnn_model_forward.3} parent=5 // pred_check_branch
      %929 = sbr.rel (%p927) target = $region72
    $region71: #{pathnn_model_forward.3} parent=5 // pred_region
      %s930 = ssub.s32 %s12, 2
    $region72: #{pathnn_model_forward.3} parent=5 // pred_fallthru
      _
  $region6: #{pathnn_model_forward.3} parent=0 // loop_footer
    %s16 = sadd.s32 1, %s12
  $region7: #{pathnn_model_forward.3} parent=0 // loop_footer_branch
    %11 = sbr.rel target = $region3
  $region8: #{pathnn_model_forward.3} parent=0 // loop_exit
    _

// kernel: pathnn_model_forward.5
$region0: #{pathnn_model_forward.5}
  #allocation0 [shape = 'u32[]', space=smem, size = 0x4, offset = 0x4, fixed_abs, tag = 'smem constant byte address 0x4 - core index']
  #allocation1 [shape = 'u32[72,128]{1,0:T(1,128)}', space=vmem, size = 0x9000, scoped, tag = 'internal scratch']
  %s0 = inlined_call_operand.vmem [shape: f32[128,128], index: 0, kind: input, shape index: {}]
  %s1 = inlined_call_operand.vmem [shape: f32[128,128], index: 1, kind: input, shape index: {}]
  %s2 = inlined_call_operand.vmem [shape: f32[128,128], index: 2, kind: input, shape index: {}]
  %s3 = inlined_call_operand.vmem [shape: bf16[128,128], index: 3, kind: input, shape index: {}]
  %s4 = inlined_call_operand.vmem [shape: bf16[128,128], index: 4, kind: input, shape index: {}]
  %s5 = inlined_call_operand.vmem [shape: bf16[128,128], index: 5, kind: input, shape index: {}]
  %s6 = inlined_call_operand.vmem [shape: f32[1,128], index: 6, kind: input, shape index: {}]
  %s7 = inlined_call_operand.vmem [shape: bf16[128,128], index: 7, kind: input, shape index: {}]
  %s8 = inlined_call_operand.vmem [shape: f32[1,128], index: 8, kind: input, shape index: {}]
  %s9 = inlined_call_operand.vmem [shape: f32[128,128], index: 9, kind: output, shape index: {}]
  %s10 = sld [smem:[#allocation0]]
  $region46: #{pathnn_model_forward.5} parent=0
    _
  %s12 = ssub.s32 1, %s10
  %s13 = scalar_select 0, %s12, %s10
  // Predicated region
  $region2: #{pathnn_model_forward.5} parent=0 // pred_check
    _
  $region3: #{pathnn_model_forward.5} parent=0 // pred_check_branch
    %15 = sbr.rel (0) target = $region5
  $region4: #{pathnn_model_forward.5} parent=0 // pred_region
    _
  $region5: #{pathnn_model_forward.5} parent=0 // pred_fallthru
    _
  // Predicated region
  $region6: #{pathnn_model_forward.5} parent=0 // pred_check
    _
  $region7: #{pathnn_model_forward.5} parent=0 // pred_check_branch
    %17 = sbr.rel (0) target = $region9
  $region8: #{pathnn_model_forward.5} parent=0 // pred_region
    _
  $region9: #{pathnn_model_forward.5} parent=0 // pred_fallthru
    _
  // Predicated region
  $region10: #{pathnn_model_forward.5} parent=0 // pred_check
    _
  $region11: #{pathnn_model_forward.5} parent=0 // pred_check_branch
    %19 = sbr.rel (0) target = $region13
  $region12: #{pathnn_model_forward.5} parent=0 // pred_region
    _
  $region13: #{pathnn_model_forward.5} parent=0 // pred_fallthru
    _
  // Predicated region
  $region14: #{pathnn_model_forward.5} parent=0 // pred_check
    _
  $region15: #{pathnn_model_forward.5} parent=0 // pred_check_branch
    %21 = sbr.rel (0) target = $region17
  $region16: #{pathnn_model_forward.5} parent=0 // pred_region
    _
  $region17: #{pathnn_model_forward.5} parent=0 // pred_fallthru
    _
  // Predicated region
  $region18: #{pathnn_model_forward.5} parent=0 // pred_check
    _
  $region19: #{pathnn_model_forward.5} parent=0 // pred_check_branch
    %23 = sbr.rel (0) target = $region21
  $region20: #{pathnn_model_forward.5} parent=0 // pred_region
    _
  $region21: #{pathnn_model_forward.5} parent=0 // pred_fallthru
    _
  // Predicated region
  $region22: #{pathnn_model_forward.5} parent=0 // pred_check
    _
  $region23: #{pathnn_model_forward.5} parent=0 // pred_check_branch
    %25 = sbr.rel (0) target = $region25
  $region24: #{pathnn_model_forward.5} parent=0 // pred_region
    _
  $region25: #{pathnn_model_forward.5} parent=0 // pred_fallthru
    _
  // Predicated region
  $region26: #{pathnn_model_forward.5} parent=0 // pred_check
    _
  $region27: #{pathnn_model_forward.5} parent=0 // pred_check_branch
    %27 = sbr.rel (0) target = $region29
  $region28: #{pathnn_model_forward.5} parent=0 // pred_region
    _
  $region29: #{pathnn_model_forward.5} parent=0 // pred_fallthru
    _
  // Predicated region
  $region30: #{pathnn_model_forward.5} parent=0 // pred_check
    _
  $region31: #{pathnn_model_forward.5} parent=0 // pred_check_branch
    %29 = sbr.rel (0) target = $region33
  $region32: #{pathnn_model_forward.5} parent=0 // pred_region
    _
  $region33: #{pathnn_model_forward.5} parent=0 // pred_fallthru
    _
  // Predicated region
  $region34: #{pathnn_model_forward.5} parent=0 // pred_check
    _
  $region35: #{pathnn_model_forward.5} parent=0 // pred_check_branch
    %31 = sbr.rel (0) target = $region37
  $region36: #{pathnn_model_forward.5} parent=0 // pred_region
    _
  $region37: #{pathnn_model_forward.5} parent=0 // pred_fallthru
    _
  %v32 = vld [vmem:[%s0] sm:$0xff]
  %v33 = vld [vmem:[%s0 + $0x8] sm:$0xff]
  %v34 = vld [vmem:[%s0 + $0x10] sm:$0xff]
  %v35 = vld [vmem:[%s0 + $0x18] sm:$0xff]
  %v36 = vld [vmem:[%s0 + $0x20] sm:$0xff]
  %v37 = vld [vmem:[%s0 + $0x28] sm:$0xff]
  %v38 = vld [vmem:[%s0 + $0x30] sm:$0xff]
  %v39 = vld [vmem:[%s0 + $0x38] sm:$0xff]
  %v40 = vld [vmem:[%s0 + $0x40] sm:$0xff]
  %v41 = vld [vmem:[%s0 + $0x48] sm:$0xff]
  %v42 = vld [vmem:[%s0 + $0x50] sm:$0xff]
  %v43 = vld [vmem:[%s0 + $0x58] sm:$0xff]
  %v44 = vld [vmem:[%s0 + $0x60] sm:$0xff]
  %v45 = vld [vmem:[%s0 + $0x68] sm:$0xff]
  %v46 = vld [vmem:[%s0 + $0x70] sm:$0xff]
  %v47 = vld [vmem:[%s0 + $0x78] sm:$0xff]
  %v48 = vpack.c.bf16 %v33, %v32
  %v49 = vpack.c.bf16 %v35, %v34
  %v50 = vpack.c.bf16 %v37, %v36
  %v51 = vpack.c.bf16 %v39, %v38
  %v52 = vpack.c.bf16 %v41, %v40
  %v53 = vpack.c.bf16 %v43, %v42
  %v54 = vpack.c.bf16 %v45, %v44
  %v55 = vpack.c.bf16 %v47, %v46
  %v56 = vld [vmem:[%s3] sm:$0xf]
  %v57 = vld [vmem:[%s3 + $0x4] sm:$0xf]
  %v58 = vld [vmem:[%s3 + $0x8] sm:$0xf]
  %v59 = vld [vmem:[%s3 + $0xc] sm:$0xf]
  %v60 = vld [vmem:[%s3 + $0x10] sm:$0xf]
  %v61 = vld [vmem:[%s3 + $0x14] sm:$0xf]
  %v62 = vld [vmem:[%s3 + $0x18] sm:$0xf]
  %v63 = vld [vmem:[%s3 + $0x1c] sm:$0xf]
  %v64 = vld [vmem:[%s3 + $0x20] sm:$0xf]
  %v65 = vld [vmem:[%s3 + $0x24] sm:$0xf]
  %v66 = vld [vmem:[%s3 + $0x28] sm:$0xf]
  %v67 = vld [vmem:[%s3 + $0x2c] sm:$0xf]
  %v68 = vld [vmem:[%s3 + $0x30] sm:$0xf]
  %v69 = vld [vmem:[%s3 + $0x34] sm:$0xf]
  %v70 = vld [vmem:[%s3 + $0x38] sm:$0xf]
  %v71 = vld [vmem:[%s3 + $0x3c] sm:$0xf]
  %v72 = vld [vmem:[%s1] sm:$0xff]
  %v73 = vld [vmem:[%s1 + $0x8] sm:$0xff]
  %v74 = vld [vmem:[%s1 + $0x10] sm:$0xff]
  %v75 = vld [vmem:[%s1 + $0x18] sm:$0xff]
  %v76 = vld [vmem:[%s1 + $0x20] sm:$0xff]
  %v77 = vld [vmem:[%s1 + $0x28] sm:$0xff]
  %v78 = vld [vmem:[%s1 + $0x30] sm:$0xff]
  %v79 = vld [vmem:[%s1 + $0x38] sm:$0xff]
  %v80 = vld [vmem:[%s1 + $0x40] sm:$0xff]
  %v81 = vld [vmem:[%s1 + $0x48] sm:$0xff]
  %v82 = vld [vmem:[%s1 + $0x50] sm:$0xff]
  %v83 = vld [vmem:[%s1 + $0x58] sm:$0xff]
  %v84 = vld [vmem:[%s1 + $0x60] sm:$0xff]
  %v85 = vld [vmem:[%s1 + $0x68] sm:$0xff]
  %v86 = vld [vmem:[%s1 + $0x70] sm:$0xff]
  %v87 = vld [vmem:[%s1 + $0x78] sm:$0xff]
  %v88 = vpack.c.bf16 %v73, %v72
  %v89 = vpack.c.bf16 %v75, %v74
  %v90 = vpack.c.bf16 %v77, %v76
  %v91 = vpack.c.bf16 %v79, %v78
  %v92 = vpack.c.bf16 %v81, %v80
  %v93 = vpack.c.bf16 %v83, %v82
  %v94 = vpack.c.bf16 %v85, %v84
  %v95 = vpack.c.bf16 %v87, %v86
  %v96 = vld [vmem:[%s4] sm:$0xf]
  %v97 = vld [vmem:[%s4 + $0x4] sm:$0xf]
  %v98 = vld [vmem:[%s4 + $0x8] sm:$0xf]
  %v99 = vld [vmem:[%s4 + $0xc] sm:$0xf]
  %v100 = vld [vmem:[%s4 + $0x10] sm:$0xf]
  %v101 = vld [vmem:[%s4 + $0x14] sm:$0xf]
  %v102 = vld [vmem:[%s4 + $0x18] sm:$0xf]
  %v103 = vld [vmem:[%s4 + $0x1c] sm:$0xf]
  %v104 = vld [vmem:[%s4 + $0x20] sm:$0xf]
  %v105 = vld [vmem:[%s4 + $0x24] sm:$0xf]
  %v106 = vld [vmem:[%s4 + $0x28] sm:$0xf]
  %v107 = vld [vmem:[%s4 + $0x2c] sm:$0xf]
  %v108 = vld [vmem:[%s4 + $0x30] sm:$0xf]
  %v109 = vld [vmem:[%s4 + $0x34] sm:$0xf]
  %v110 = vld [vmem:[%s4 + $0x38] sm:$0xf]
  %v111 = vld [vmem:[%s4 + $0x3c] sm:$0xf]
  %v128 = vunpack.c.l.b16 %v96
  %v129 = vunpack.c.l.b16 %v97
  %v130 = vunpack.c.l.b16 %v98
  %v131 = vunpack.c.l.b16 %v99
  %v132 = vunpack.c.l.b16 %v100
  %v133 = vunpack.c.l.b16 %v101
  %v134 = vunpack.c.l.b16 %v102
  %v135 = vunpack.c.l.b16 %v103
  %v136 = vunpack.c.l.b16 %v104
  %v137 = vunpack.c.l.b16 %v105
  %v138 = vunpack.c.l.b16 %v106
  %v139 = vunpack.c.l.b16 %v107
  %v140 = vunpack.c.l.b16 %v108
  %v141 = vunpack.c.l.b16 %v109
  %v142 = vunpack.c.l.b16 %v110
  %v143 = vunpack.c.l.b16 %v111
  %v144 = vpack.c.b16 %v129, %v128
  %v145 = vpack.c.b16 %v131, %v130
  %v146 = vpack.c.b16 %v133, %v132
  %v147 = vpack.c.b16 %v135, %v134
  %v148 = vpack.c.b16 %v137, %v136
  %v149 = vpack.c.b16 %v139, %v138
  %v150 = vpack.c.b16 %v141, %v140
  %v151 = vpack.c.b16 %v143, %v142
  %160 = vmatpush.bf16.msra.mxu0 %v151
  %161 = vmatpush.bf16.msra.mxu0 %v150
  %162 = vmatpush.bf16.msra.mxu0 %v149
  %163 = vmatpush.bf16.msra.mxu0 %v148
  %164 = vmatpush.bf16.msra.mxu0 %v147
  %165 = vmatpush.bf16.msra.mxu0 %v146
  %166 = vmatpush.bf16.msra.mxu0 %v145
  %167 = vmatpush.bf16.msra.mxu0 %v144
  %168 = vmatmul.bf16.gmra.mxu0 %v88
  %v169 = vpop.f32.mrf.mxu0
  %v170 = vadd.f32 0.0, %v169
  %v171 = vpop.f32.mrf.mxu0
  %v172 = vadd.f32 0.0, %v171
  %173 = vmatmul.bf16.gmra.mxu0 %v89
  %v174 = vpop.f32.mrf.mxu0
  %v175 = vadd.f32 0.0, %v174
  %v176 = vpop.f32.mrf.mxu0
  %v177 = vadd.f32 0.0, %v176
  %178 = vmatmul.bf16.gmra.mxu0 %v90
  %v179 = vpop.f32.mrf.mxu0
  %v180 = vadd.f32 0.0, %v179
  %v181 = vpop.f32.mrf.mxu0
  %v182 = vadd.f32 0.0, %v181
  %183 = vmatmul.bf16.gmra.mxu0 %v91
  %v184 = vpop.f32.mrf.mxu0
  %v185 = vadd.f32 0.0, %v184
  %v186 = vpop.f32.mrf.mxu0
  %v187 = vadd.f32 0.0, %v186
  %188 = vmatmul.bf16.gmra.mxu0 %v92
  %v189 = vpop.f32.mrf.mxu0
  %v190 = vadd.f32 0.0, %v189
  %v191 = vpop.f32.mrf.mxu0
  %v192 = vadd.f32 0.0, %v191
  %193 = vmatmul.bf16.gmra.mxu0 %v93
  %v194 = vpop.f32.mrf.mxu0
  %v195 = vadd.f32 0.0, %v194
  %v196 = vpop.f32.mrf.mxu0
  %v197 = vadd.f32 0.0, %v196
  %198 = vmatmul.bf16.gmra.mxu0 %v94
  %v199 = vpop.f32.mrf.mxu0
  %v200 = vadd.f32 0.0, %v199
  %v201 = vpop.f32.mrf.mxu0
  %v202 = vadd.f32 0.0, %v201
  %203 = vmatmul.bf16.gmra.mxu0 %v95
  %v204 = vpop.f32.mrf.mxu0
  %v205 = vadd.f32 0.0, %v204
  %v206 = vpop.f32.mrf.mxu0
  %v207 = vadd.f32 0.0, %v206
  %208 = vdwg.mxu0
  %v225 = vunpack.c.l.b16 %v56
  %v226 = vunpack.c.l.b16 %v57
  %v227 = vunpack.c.l.b16 %v58
  %v228 = vunpack.c.l.b16 %v59
  %v229 = vunpack.c.l.b16 %v60
  %v230 = vunpack.c.l.b16 %v61
  %v231 = vunpack.c.l.b16 %v62
  %v232 = vunpack.c.l.b16 %v63
  %v233 = vunpack.c.l.b16 %v64
  %v234 = vunpack.c.l.b16 %v65
  %v235 = vunpack.c.l.b16 %v66
  %v236 = vunpack.c.l.b16 %v67
  %v237 = vunpack.c.l.b16 %v68
  %v238 = vunpack.c.l.b16 %v69
  %v239 = vunpack.c.l.b16 %v70
  %v240 = vunpack.c.l.b16 %v71
  %v241 = vpack.c.b16 %v226, %v225
  %v242 = vpack.c.b16 %v228, %v227
  %v243 = vpack.c.b16 %v230, %v229
  %v244 = vpack.c.b16 %v232, %v231
  %v245 = vpack.c.b16 %v234, %v233
  %v246 = vpack.c.b16 %v236, %v235
  %v247 = vpack.c.b16 %v238, %v237
  %v248 = vpack.c.b16 %v240, %v239
  %257 = vmatpush.bf16.msra.mxu0 %v248
  %258 = vmatpush.bf16.msra.mxu0 %v247
  %259 = vmatpush.bf16.msra.mxu0 %v246
  %260 = vmatpush.bf16.msra.mxu0 %v245
  %261 = vmatpush.bf16.msra.mxu0 %v244
  %262 = vmatpush.bf16.msra.mxu0 %v243
  %263 = vmatpush.bf16.msra.mxu0 %v242
  %264 = vmatpush.bf16.msra.mxu0 %v241
  %265 = vmatmul.bf16.gmra.mxu0 %v48
  %v266 = vpop.f32.mrf.mxu0
  %v267 = vadd.f32 %v170, %v266
  %v268 = vpop.f32.mrf.mxu0
  %v269 = vadd.f32 %v172, %v268
  %270 = vmatmul.bf16.gmra.mxu0 %v49
  %v271 = vpop.f32.mrf.mxu0
  %v272 = vadd.f32 %v175, %v271
  %v273 = vpop.f32.mrf.mxu0
  %v274 = vadd.f32 %v177, %v273
  %275 = vmatmul.bf16.gmra.mxu0 %v50
  %v276 = vpop.f32.mrf.mxu0
  %v277 = vadd.f32 %v180, %v276
  %v278 = vpop.f32.mrf.mxu0
  %v279 = vadd.f32 %v182, %v278
  %280 = vmatmul.bf16.gmra.mxu0 %v51
  %v281 = vpop.f32.mrf.mxu0
  %v282 = vadd.f32 %v185, %v281
  %v283 = vpop.f32.mrf.mxu0
  %v284 = vadd.f32 %v187, %v283
  %285 = vmatmul.bf16.gmra.mxu0 %v52
  %v286 = vpop.f32.mrf.mxu0
  %v287 = vadd.f32 %v190, %v286
  %v288 = vpop.f32.mrf.mxu0
  %v289 = vadd.f32 %v192, %v288
  %290 = vmatmul.bf16.gmra.mxu0 %v53
  %v291 = vpop.f32.mrf.mxu0
  %v292 = vadd.f32 %v195, %v291
  %v293 = vpop.f32.mrf.mxu0
  %v294 = vadd.f32 %v197, %v293
  %295 = vmatmul.bf16.gmra.mxu0 %v54
  %v296 = vpop.f32.mrf.mxu0
  %v297 = vadd.f32 %v200, %v296
  %v298 = vpop.f32.mrf.mxu0
  %v299 = vadd.f32 %v202, %v298
  %300 = vmatmul.bf16.gmra.mxu0 %v55
  %v301 = vpop.f32.mrf.mxu0
  %v302 = vadd.f32 %v205, %v301
  %v303 = vpop.f32.mrf.mxu0
  %v304 = vadd.f32 %v207, %v303
  %305 = vdwg.mxu0
  %v306 = vld [vmem:[%s2] sm:$0xff]
  %v307 = vld [vmem:[%s2 + $0x8] sm:$0xff]
  %v308 = vld [vmem:[%s2 + $0x10] sm:$0xff]
  %v309 = vld [vmem:[%s2 + $0x18] sm:$0xff]
  %v310 = vld [vmem:[%s2 + $0x20] sm:$0xff]
  %v311 = vld [vmem:[%s2 + $0x28] sm:$0xff]
  %v312 = vld [vmem:[%s2 + $0x30] sm:$0xff]
  %v313 = vld [vmem:[%s2 + $0x38] sm:$0xff]
  %v314 = vld [vmem:[%s2 + $0x40] sm:$0xff]
  %v315 = vld [vmem:[%s2 + $0x48] sm:$0xff]
  %v316 = vld [vmem:[%s2 + $0x50] sm:$0xff]
  %v317 = vld [vmem:[%s2 + $0x58] sm:$0xff]
  %v318 = vld [vmem:[%s2 + $0x60] sm:$0xff]
  %v319 = vld [vmem:[%s2 + $0x68] sm:$0xff]
  %v320 = vld [vmem:[%s2 + $0x70] sm:$0xff]
  %v321 = vld [vmem:[%s2 + $0x78] sm:$0xff]
  %v322 = vpack.c.bf16 %v307, %v306
  %v323 = vpack.c.bf16 %v309, %v308
  %v324 = vpack.c.bf16 %v311, %v310
  %v325 = vpack.c.bf16 %v313, %v312
  %v326 = vpack.c.bf16 %v315, %v314
  %v327 = vpack.c.bf16 %v317, %v316
  %v328 = vpack.c.bf16 %v319, %v318
  %v329 = vpack.c.bf16 %v321, %v320
  %v330 = vld [vmem:[%s5] sm:$0xf]
  %v331 = vld [vmem:[%s5 + $0x4] sm:$0xf]
  %v332 = vld [vmem:[%s5 + $0x8] sm:$0xf]
  %v333 = vld [vmem:[%s5 + $0xc] sm:$0xf]
  %v334 = vld [vmem:[%s5 + $0x10] sm:$0xf]
  %v335 = vld [vmem:[%s5 + $0x14] sm:$0xf]
  %v336 = vld [vmem:[%s5 + $0x18] sm:$0xf]
  %v337 = vld [vmem:[%s5 + $0x1c] sm:$0xf]
  %v338 = vld [vmem:[%s5 + $0x20] sm:$0xf]
  %v339 = vld [vmem:[%s5 + $0x24] sm:$0xf]
  %v340 = vld [vmem:[%s5 + $0x28] sm:$0xf]
  %v341 = vld [vmem:[%s5 + $0x2c] sm:$0xf]
  %v342 = vld [vmem:[%s5 + $0x30] sm:$0xf]
  %v343 = vld [vmem:[%s5 + $0x34] sm:$0xf]
  %v344 = vld [vmem:[%s5 + $0x38] sm:$0xf]
  %v345 = vld [vmem:[%s5 + $0x3c] sm:$0xf]
  %v362 = vunpack.c.l.b16 %v330
  %v363 = vunpack.c.l.b16 %v331
  %v364 = vunpack.c.l.b16 %v332
  %v365 = vunpack.c.l.b16 %v333
  %v366 = vunpack.c.l.b16 %v334
  %v367 = vunpack.c.l.b16 %v335
  %v368 = vunpack.c.l.b16 %v336
  %v369 = vunpack.c.l.b16 %v337
  %v370 = vunpack.c.l.b16 %v338
  %v371 = vunpack.c.l.b16 %v339
  %v372 = vunpack.c.l.b16 %v340
  %v373 = vunpack.c.l.b16 %v341
  %v374 = vunpack.c.l.b16 %v342
  %v375 = vunpack.c.l.b16 %v343
  %v376 = vunpack.c.l.b16 %v344
  %v377 = vunpack.c.l.b16 %v345
  %v378 = vpack.c.b16 %v363, %v362
  %v379 = vpack.c.b16 %v365, %v364
  %v380 = vpack.c.b16 %v367, %v366
  %v381 = vpack.c.b16 %v369, %v368
  %v382 = vpack.c.b16 %v371, %v370
  %v383 = vpack.c.b16 %v373, %v372
  %v384 = vpack.c.b16 %v375, %v374
  %v385 = vpack.c.b16 %v377, %v376
  %394 = vmatpush.bf16.msra.mxu0 %v385
  %395 = vmatpush.bf16.msra.mxu0 %v384
  %396 = vmatpush.bf16.msra.mxu0 %v383
  %397 = vmatpush.bf16.msra.mxu0 %v382
  %398 = vmatpush.bf16.msra.mxu0 %v381
  %399 = vmatpush.bf16.msra.mxu0 %v380
  %400 = vmatpush.bf16.msra.mxu0 %v379
  %401 = vmatpush.bf16.msra.mxu0 %v378
  %402 = vmatmul.bf16.gmra.mxu0 %v322
  %v403 = vpop.f32.mrf.mxu0
  %v404 = vadd.f32 0.0, %v403
  %v405 = vpop.f32.mrf.mxu0
  %v406 = vadd.f32 0.0, %v405
  %407 = vmatmul.bf16.gmra.mxu0 %v323
  %v408 = vpop.f32.mrf.mxu0
  %v409 = vadd.f32 0.0, %v408
  %v410 = vpop.f32.mrf.mxu0
  %v411 = vadd.f32 0.0, %v410
  %412 = vmatmul.bf16.gmra.mxu0 %v324
  %v413 = vpop.f32.mrf.mxu0
  %v414 = vadd.f32 0.0, %v413
  %v415 = vpop.f32.mrf.mxu0
  %v416 = vadd.f32 0.0, %v415
  %417 = vmatmul.bf16.gmra.mxu0 %v325
  %v418 = vpop.f32.mrf.mxu0
  %v419 = vadd.f32 0.0, %v418
  %v420 = vpop.f32.mrf.mxu0
  %v421 = vadd.f32 0.0, %v420
  %422 = vmatmul.bf16.gmra.mxu0 %v326
  %v423 = vpop.f32.mrf.mxu0
  %v424 = vadd.f32 0.0, %v423
  %v425 = vpop.f32.mrf.mxu0
  %v426 = vadd.f32 0.0, %v425
  %427 = vmatmul.bf16.gmra.mxu0 %v327
  %v428 = vpop.f32.mrf.mxu0
  %v429 = vadd.f32 0.0, %v428
  %v430 = vpop.f32.mrf.mxu0
  %v431 = vadd.f32 0.0, %v430
  %432 = vmatmul.bf16.gmra.mxu0 %v328
  %v433 = vpop.f32.mrf.mxu0
  %v434 = vadd.f32 0.0, %v433
  %v435 = vpop.f32.mrf.mxu0
  %v436 = vadd.f32 0.0, %v435
  %437 = vmatmul.bf16.gmra.mxu0 %v329
  %v438 = vpop.f32.mrf.mxu0
  %v439 = vadd.f32 0.0, %v438
  %v440 = vpop.f32.mrf.mxu0
  %v441 = vadd.f32 0.0, %v440
  %442 = vdwg.mxu0
  %v443 = vadd.f32 %v267, %v404
  %v444 = vadd.f32 %v269, %v406
  %v445 = vadd.f32 %v272, %v409
  %v446 = vadd.f32 %v274, %v411
  %v447 = vadd.f32 %v277, %v414
  %v448 = vadd.f32 %v279, %v416
  %v449 = vadd.f32 %v282, %v419
  %v450 = vadd.f32 %v284, %v421
  %v451 = vadd.f32 %v287, %v424
  %v452 = vadd.f32 %v289, %v426
  %v453 = vadd.f32 %v292, %v429
  %v454 = vadd.f32 %v294, %v431
  %v455 = vadd.f32 %v297, %v434
  %v456 = vadd.f32 %v299, %v436
  %v457 = vadd.f32 %v302, %v439
  %v458 = vadd.f32 %v304, %v441
  %v459 = vld [vmem:[%s6] sm:$0x1]
  %v461 = vperm.slane %v459, 0
  %v463 = vadd.f32 %v443, %v461
  %v464 = vadd.f32 %v444, %v461
  %v465 = vadd.f32 %v445, %v461
  %v466 = vadd.f32 %v446, %v461
  %v467 = vadd.f32 %v447, %v461
  %v468 = vadd.f32 %v448, %v461
  %v469 = vadd.f32 %v449, %v461
  %v470 = vadd.f32 %v450, %v461
  %v471 = vadd.f32 %v451, %v461
  %v472 = vadd.f32 %v452, %v461
  %v473 = vadd.f32 %v453, %v461
  %v474 = vadd.f32 %v454, %v461
  %v475 = vadd.f32 %v455, %v461
  %v476 = vadd.f32 %v456, %v461
  %v477 = vadd.f32 %v457, %v461
  %v478 = vadd.f32 %v458, %v461
  %v479 = vmax.f32 %v463, 0.0
  %v480 = vmax.f32 %v464, 0.0
  %v481 = vmax.f32 %v465, 0.0
  %v482 = vmax.f32 %v466, 0.0
  %v483 = vmax.f32 %v467, 0.0
  %v484 = vmax.f32 %v468, 0.0
  %v485 = vmax.f32 %v469, 0.0
  %v486 = vmax.f32 %v470, 0.0
  %v487 = vmax.f32 %v471, 0.0
  %v488 = vmax.f32 %v472, 0.0
  %v489 = vmax.f32 %v473, 0.0
  %v490 = vmax.f32 %v474, 0.0
  %v491 = vmax.f32 %v475, 0.0
  %v492 = vmax.f32 %v476, 0.0
  %v493 = vmax.f32 %v477, 0.0
  %v494 = vmax.f32 %v478, 0.0
  %v495 = vpack.c.bf16 %v480, %v479
  %v496 = vpack.c.bf16 %v482, %v481
  %v497 = vpack.c.bf16 %v484, %v483
  %v498 = vpack.c.bf16 %v486, %v485
  %v499 = vpack.c.bf16 %v488, %v487
  %v500 = vpack.c.bf16 %v490, %v489
  %v501 = vpack.c.bf16 %v492, %v491
  %v502 = vpack.c.bf16 %v494, %v493
  %v503 = vld [vmem:[%s7] sm:$0xf]
  %v504 = vld [vmem:[%s7 + $0x4] sm:$0xf]
  %v505 = vld [vmem:[%s7 + $0x8] sm:$0xf]
  %v506 = vld [vmem:[%s7 + $0xc] sm:$0xf]
  %v507 = vld [vmem:[%s7 + $0x10] sm:$0xf]
  %v508 = vld [vmem:[%s7 + $0x14] sm:$0xf]
  %v509 = vld [vmem:[%s7 + $0x18] sm:$0xf]
  %v510 = vld [vmem:[%s7 + $0x1c] sm:$0xf]
  %v511 = vld [vmem:[%s7 + $0x20] sm:$0xf]
  %v512 = vld [vmem:[%s7 + $0x24] sm:$0xf]
  %v513 = vld [vmem:[%s7 + $0x28] sm:$0xf]
  %v514 = vld [vmem:[%s7 + $0x2c] sm:$0xf]
  %v515 = vld [vmem:[%s7 + $0x30] sm:$0xf]
  %v516 = vld [vmem:[%s7 + $0x34] sm:$0xf]
  %v517 = vld [vmem:[%s7 + $0x38] sm:$0xf]
  %v518 = vld [vmem:[%s7 + $0x3c] sm:$0xf]
  %v519 = vld [vmem:[%s8] sm:$0x1]
  %v521 = vperm.slane %v519, 0
  %v539 = vunpack.c.l.b16 %v503
  %v540 = vunpack.c.l.b16 %v504
  %v541 = vunpack.c.l.b16 %v505
  %v542 = vunpack.c.l.b16 %v506
  %v543 = vunpack.c.l.b16 %v507
  %v544 = vunpack.c.l.b16 %v508
  %v545 = vunpack.c.l.b16 %v509
  %v546 = vunpack.c.l.b16 %v510
  %v547 = vunpack.c.l.b16 %v511
  %v548 = vunpack.c.l.b16 %v512
  %v549 = vunpack.c.l.b16 %v513
  %v550 = vunpack.c.l.b16 %v514
  %v551 = vunpack.c.l.b16 %v515
  %v552 = vunpack.c.l.b16 %v516
  %v553 = vunpack.c.l.b16 %v517
  %v554 = vunpack.c.l.b16 %v518
  %v555 = vpack.c.b16 %v540, %v539
  %v556 = vpack.c.b16 %v542, %v541
  %v557 = vpack.c.b16 %v544, %v543
  %v558 = vpack.c.b16 %v546, %v545
  %v559 = vpack.c.b16 %v548, %v547
  %v560 = vpack.c.b16 %v550, %v549
  %v561 = vpack.c.b16 %v552, %v551
  %v562 = vpack.c.b16 %v554, %v553
  %571 = vmatpush.bf16.msra.mxu0 %v562
  %572 = vmatpush.bf16.msra.mxu0 %v561
  %573 = vmatpush.bf16.msra.mxu0 %v560
  %574 = vmatpush.bf16.msra.mxu0 %v559
  %575 = vmatpush.bf16.msra.mxu0 %v558
  %576 = vmatpush.bf16.msra.mxu0 %v557
  %577 = vmatpush.bf16.msra.mxu0 %v556
  %578 = vmatpush.bf16.msra.mxu0 %v555
  %579 = vmatmul.bf16.gmra.mxu0 %v495
  %v580 = vpop.f32.mrf.mxu0
  %v581 = vadd.f32 %v521, %v580
  %v582 = vpop.f32.mrf.mxu0
  %v583 = vadd.f32 %v521, %v582
  %584 = vmatmul.bf16.gmra.mxu0 %v496
  %v585 = vpop.f32.mrf.mxu0
  %v586 = vadd.f32 %v521, %v585
  %v587 = vpop.f32.mrf.mxu0
  %v588 = vadd.f32 %v521, %v587
  %589 = vmatmul.bf16.gmra.mxu0 %v497
  %v590 = vpop.f32.mrf.mxu0
  %v591 = vadd.f32 %v521, %v590
  %v592 = vpop.f32.mrf.mxu0
  %v593 = vadd.f32 %v521, %v592
  %594 = vmatmul.bf16.gmra.mxu0 %v498
  %v595 = vpop.f32.mrf.mxu0
  %v596 = vadd.f32 %v521, %v595
  %v597 = vpop.f32.mrf.mxu0
  %v598 = vadd.f32 %v521, %v597
  %599 = vmatmul.bf16.gmra.mxu0 %v499
  %v600 = vpop.f32.mrf.mxu0
  %v601 = vadd.f32 %v521, %v600
  %v602 = vpop.f32.mrf.mxu0
  %v603 = vadd.f32 %v521, %v602
  %604 = vmatmul.bf16.gmra.mxu0 %v500
  %v605 = vpop.f32.mrf.mxu0
  %v606 = vadd.f32 %v521, %v605
  %v607 = vpop.f32.mrf.mxu0
  %v608 = vadd.f32 %v521, %v607
  %609 = vmatmul.bf16.gmra.mxu0 %v501
  %v610 = vpop.f32.mrf.mxu0
  %v611 = vadd.f32 %v521, %v610
  %v612 = vpop.f32.mrf.mxu0
  %v613 = vadd.f32 %v521, %v612
  %614 = vmatmul.bf16.gmra.mxu0 %v502
  %v615 = vpop.f32.mrf.mxu0
  %v616 = vadd.f32 %v521, %v615
  %v617 = vpop.f32.mrf.mxu0
  %v618 = vadd.f32 %v521, %v617
  %619 = vdwg.mxu0
  %620 = vst [vmem:[%s9] sm:$0xff] %v581
  %621 = vst [vmem:[%s9 + $0x8] sm:$0xff] %v583
  %622 = vst [vmem:[%s9 + $0x10] sm:$0xff] %v586
  %623 = vst [vmem:[%s9 + $0x18] sm:$0xff] %v588
  %624 = vst [vmem:[%s9 + $0x20] sm:$0xff] %v591
  %625 = vst [vmem:[%s9 + $0x28] sm:$0xff] %v593
  %626 = vst [vmem:[%s9 + $0x30] sm:$0xff] %v596
  %627 = vst [vmem:[%s9 + $0x38] sm:$0xff] %v598
  %628 = vst [vmem:[%s9 + $0x40] sm:$0xff] %v601
  %629 = vst [vmem:[%s9 + $0x48] sm:$0xff] %v603
  %630 = vst [vmem:[%s9 + $0x50] sm:$0xff] %v606
  %631 = vst [vmem:[%s9 + $0x58] sm:$0xff] %v608
  %632 = vst [vmem:[%s9 + $0x60] sm:$0xff] %v611
  %633 = vst [vmem:[%s9 + $0x68] sm:$0xff] %v613
  %634 = vst [vmem:[%s9 + $0x70] sm:$0xff] %v616
  %635 = vst [vmem:[%s9 + $0x78] sm:$0xff] %v618
  // Predicated region
  $region38: #{pathnn_model_forward.5} parent=0 // pred_check
    _
  $region39: #{pathnn_model_forward.5} parent=0 // pred_check_branch
    %637 = sbr.rel (0) target = $region41
  $region40: #{pathnn_model_forward.5} parent=0 // pred_region
    _
  $region41: #{pathnn_model_forward.5} parent=0 // pred_fallthru
    _
  // Predicated region
  $region42: #{pathnn_model_forward.5} parent=0 // pred_check
    _
  $region43: #{pathnn_model_forward.5} parent=0 // pred_check_branch
    %639 = sbr.rel (0) target = $region45
  $region44: #{pathnn_model_forward.5} parent=0 // pred_region
    _
  $region45: #{pathnn_model_forward.5} parent=0 // pred_fallthru
    _

</llo_original>
